<compile_context>
chip_gen: v6e
topology: v6e:2x2x1
jax: 0.10.0
libtpu: 0.0.40
codegen_flags: <defaults>
</compile_context>

<pallas_src>
import functools

import jax
import jax.numpy as jnp
import numpy as np
from jax.experimental import pallas as pl
from jax.experimental.pallas import tpu as pltpu


def _cdiv(a, b):
    return -(-a // b)


def _round_up(x, m):
    return _cdiv(x, m) * m


def _conv_band_kernel(x_ref, w_ref, b_ref, o_ref, *,
                      k, stride, tr, wo, cin, apply_relu):
    """One (batch, output-row-band) tile of Conv2d + bias (+ ReLU).

    x_ref: (BH, Wp, Cin)      halo'd input band, resident in VMEM
    w_ref: (K*K, Cin, Coutp)  per-tap weights, Coutp lane-padded to 128
    b_ref: (1, Coutp)         bias (f32)
    o_ref: (TR*Wo, Coutp)     flattened, lane-dense output tile
    """
    xb = x_ref[...]                                  # load the band once
    # f32 accumulator kept in vregs — no VMEM scratch round-trips.
    acc = jnp.zeros(o_ref.shape, dtype=jnp.float32)
    row_span = (tr - 1) * stride + 1
    col_span = (wo - 1) * stride + 1
    for dy in range(k):                              # static, unrolled taps
        for dx in range(k):
            tap = xb[dy:dy + row_span:stride,
                     dx:dx + col_span:stride, :]     # (TR, Wo, Cin)
            tap2d = tap.reshape(tr * wo, cin)        # sublane merge only
            acc = acc + jnp.dot(tap2d, w_ref[dy * k + dx],
                                preferred_element_type=jnp.float32)
    out = acc + b_ref[...]
    if apply_relu:
        out = jnp.maximum(out, 0.0)
    o_ref[...] = out.astype(o_ref.dtype)             # single lane-dense store


def conv2d_relu_pallas(x_nchw, weight, bias, *, stride=1, padding=None,
                       activation=True, compute_dtype=None):
    """Conv2d (groups=1, bias=True) + optional ReLU via a Pallas TPU kernel.

    x_nchw: (N, Cin, H, W); weight: (Cout, Cin, K, K); bias: (Cout,)
    Returns (N, Cout, Ho, Wo) matching torch.nn.Conv2d semantics.
    Set compute_dtype=jnp.bfloat16 for a bf16 input path (v6e/v7x); the
    accumulation and epilogue stay f32.
    """
    n, cin, h, w_in = x_nchw.shape
    cout, cin_w, kh, kw = weight.shape
    assert kh == kw, "square kernels only"
    assert cin_w == cin, "groups=1 only"
    # TODO(synk): grouped conv (groups > 1) not implemented in the Pallas path.
    k = kh
    pad = k // 2 if padding is None else padding

    ho = (h + 2 * pad - k) // stride + 1
    wo = (w_in + 2 * pad - k) // stride + 1
    assert ho >= 1 and wo >= 1
    wp = w_in + 2 * pad

    # ---- tiling -------------------------------------------------------------
    # One grid step = TR output rows of one image, i.e. a (TR*Wo, Coutp)
    # flattened matmul tile.  Target ~512 rows per tile to amortize the
    # ~0.35us per-grid-step overhead; cap at the full image height.
    tr = max(1, min(ho, _cdiv(512, wo)))      # output rows per band
    nb = _cdiv(ho, tr)                        # row-bands per image
    bh = (tr - 1) * stride + k                # input rows per band (with halo)
    tm = tr * wo                              # rows of the flattened tile
    coutp = _round_up(cout, 128)              # lane-dense output width

    # ---- glue (plain JAX): layout + halo'd row bands -------------------------
    x = jnp.transpose(x_nchw, (0, 2, 3, 1))                       # NHWC
    hp_needed = (nb * tr - 1) * stride + k    # rows the last band will read
    pad_bottom = pad + max(0, hp_needed - (h + 2 * pad))
    x = jnp.pad(x, ((0, 0), (pad, pad_bottom), (pad, pad), (0, 0)))
    # Overlapping row-bands: only the (k-1)-row halo between neighbouring
    # bands is duplicated (~1x HBM traffic), unlike full im2col (k*k x).
    bands = [x[:, b * tr * stride: b * tr * stride + bh] for b in range(nb)]
    x_bands = jnp.stack(bands, axis=1).reshape(n * nb, bh, wp, cin)

    # Per-tap weights folded to (K*K, Cin, Coutp); bias to (1, Coutp), both
    # zero-padded on the lane axis so the output tile is 128-lane dense.
    w_taps = jnp.transpose(weight, (2, 3, 1, 0)).reshape(k * k, cin, cout)
    w_taps = jnp.pad(w_taps, ((0, 0), (0, 0), (0, coutp - cout)))
    b2 = jnp.pad(bias, (0, coutp - cout)).reshape(1, coutp).astype(jnp.float32)

    if compute_dtype is not None:             # optional bf16 path (v6e/v7x)
        x_bands = x_bands.astype(compute_dtype)
        w_taps = w_taps.astype(compute_dtype)

    kernel = functools.partial(_conv_band_kernel, k=k, stride=stride, tr=tr,
                               wo=wo, cin=cin, apply_relu=activation)
    out_tiles = pl.pallas_call(
        kernel,
        out_shape=jax.ShapeDtypeStruct((n * nb, tm, coutp), x_nchw.dtype),
        grid=(n * nb,),
        in_specs=[
            # One halo'd band per step; leading (band) axis squeezed away.
            pl.BlockSpec((None, bh, wp, cin), lambda i: (i, 0, 0, 0)),
            # Weights / bias: constant block index -> stay resident in VMEM.
            pl.BlockSpec((k * k, cin, coutp), lambda i: (0, 0, 0)),
            pl.BlockSpec((1, coutp), lambda i: (0, 0)),
        ],
        out_specs=pl.BlockSpec((None, tm, coutp), lambda i: (i, 0, 0)),
        compiler_params=pltpu.CompilerParams(
            dimension_semantics=("parallel",),   # bands shard across TCs (v7x)
            vmem_limit_bytes=48 * 1024 * 1024,   # safe on 64 MiB (v7x) VMEM
        ),
    )(x_bands, w_taps, b2)

    # (N*NB, TR*Wo, Coutp) -> (N, NB*TR, Wo, Coutp) -> crop padding -> NCHW
    out = out_tiles.reshape(n, nb * tr, wo, coutp)[:, :ho, :, :cout]
    return jnp.transpose(out, (0, 3, 1, 2))


def conv_module_forward(x_nchw, params, *, stride=1, padding=None,
                        activation=True, compute_dtype=None):
    """Equivalent of Conv(in_ch, out_ch, k, stride, padding, groups=1).forward."""
    return conv2d_relu_pallas(x_nchw, params["weight"], params["bias"],
                              stride=stride, padding=padding,
                              activation=activation,
                              compute_dtype=compute_dtype)


def init_conv_params(key, in_channels, out_channels, kernel_size):
    """Deterministic init mimicking nn.Conv2d defaults (uniform ±1/sqrt(fan_in))."""
    kw_key, kb_key = jax.random.split(key)
    fan_in = in_channels * kernel_size * kernel_size
    bound = 1.0 / np.sqrt(fan_in)
    weight = jax.random.uniform(
        kw_key, (out_channels, in_channels, kernel_size, kernel_size),
        minval=-bound, maxval=bound, dtype=jnp.float32)
    bias = jax.random.uniform(
        kb_key, (out_channels,), minval=-bound, maxval=bound, dtype=jnp.float32)
    return {"weight": weight, "bias": bias}


if __name__ == "__main__":
    key = jax.random.PRNGKey(0)
    kx, kp = jax.random.split(key)

    # Small shapes consistent with the module: NCHW input, Conv(4 -> 8, k=3).
    N, CIN, H, W = 2, 4, 16, 16
    COUT, K, STRIDE = 8, 3, 1

    x = jax.random.normal(kx, (N, CIN, H, W), dtype=jnp.float32)
    params = init_conv_params(kp, CIN, COUT, K)

    out = conv_module_forward(x, params, stride=STRIDE, padding=None,
                              activation=True)
    out = jax.block_until_ready(out)

    # Reference (plain JAX) to verify semantics match nn.Conv2d + ReLU.
    pad = K // 2
    ref = jax.lax.conv_general_dilated(
        x, params["weight"], window_strides=(STRIDE, STRIDE),
        padding=[(pad, pad), (pad, pad)],
        dimension_numbers=("NCHW", "OIHW", "NCHW"))
    ref = jnp.maximum(ref + params["bias"].reshape(1, -1, 1, 1), 0.0)

    assert out.shape == (N, COUT, H, W), out.shape
    np.testing.assert_allclose(np.asarray(out), np.asarray(ref),
                               rtol=1e-4, atol=1e-4)
    print("KERNEL_OK")
</pallas_src>

<mosaic_0001>
module attributes {stable_mosaic.version = 11 : i64} {
  func.func @_conv_band_kernel(%arg0: i32, %arg1: memref<1x18x18x4xf32, #tpu.memory_space<vmem>>, %arg2: memref<9x4x128xf32, #tpu.memory_space<vmem>>, %arg3: memref<1x128xf32, #tpu.memory_space<vmem>>, %arg4: memref<1x256x128xf32, #tpu.memory_space<vmem>>) attributes {dimension_semantics = [#tpu.dimension_semantics<parallel>], iteration_bounds = array<i64: 2>, scalar_prefetch = 0 : i64, scratch_operands = 0 : i64, tpu.core_type = #tpu.core_type<tc>, window_params = [{transform_indices = @transform_0, window_bounds = array<i64: 1, 18, 18, 4>}, {pipeline_mode = #tpu.pipeline_mode<synchronous>, transform_indices = @transform_1, window_bounds = array<i64: 9, 4, 128>}, {pipeline_mode = #tpu.pipeline_mode<synchronous>, transform_indices = @transform_2, window_bounds = array<i64: 1, 128>}, {transform_indices = @transform_3, window_bounds = array<i64: 1, 256, 128>}]} {
    %c0 = arith.constant 0 : index
    %c0_0 = arith.constant 0 : index
    %c0_1 = arith.constant 0 : index
    %c0_2 = arith.constant 0 : index
    %0 = vector.load %arg1[%c0, %c0_0, %c0_1, %c0_2] : memref<1x18x18x4xf32, #tpu.memory_space<vmem>>, vector<1x18x18x4xf32>
    %1 = vector.shape_cast %0 : vector<1x18x18x4xf32> to vector<18x18x4xf32>
    %cst = arith.constant 0.000000e+00 : f32
    %2 = vector.broadcast %cst : f32 to vector<256x128xf32>
    %3 = vector.extract_strided_slice %1 {offsets = [0, 0, 0], sizes = [16, 16, 4], strides = [1, 1, 1]} : vector<18x18x4xf32> to vector<16x16x4xf32>
    %4 = vector.shape_cast %3 : vector<16x16x4xf32> to vector<256x4xf32>
    %c0_3 = arith.constant 0 : index
    %c0_4 = arith.constant 0 : index
    %c0_5 = arith.constant 0 : index
    %5 = vector.load %arg2[%c0_3, %c0_4, %c0_5] : memref<9x4x128xf32, #tpu.memory_space<vmem>>, vector<1x4x128xf32>
    %6 = vector.shape_cast %5 : vector<1x4x128xf32> to vector<4x128xf32>
    %cst_6 = arith.constant dense<0.000000e+00> : vector<256x128xf32>
    %7 = tpu.matmul %4, %6, %cst_6 {dimension_numbers = #tpu.dot_dimension_numbers<[1], [0], [0], [1], [0, 0, 1, 1], [], []>} : vector<256x4xf32>, vector<4x128xf32>, vector<256x128xf32> -> vector<256x128xf32>
    %8 = arith.addf %2, %7 : vector<256x128xf32>
    %9 = vector.extract_strided_slice %1 {offsets = [0, 1, 0], sizes = [16, 16, 4], strides = [1, 1, 1]} : vector<18x18x4xf32> to vector<16x16x4xf32>
    %10 = vector.shape_cast %9 : vector<16x16x4xf32> to vector<256x4xf32>
    %c1 = arith.constant 1 : index
    %c0_7 = arith.constant 0 : index
    %c0_8 = arith.constant 0 : index
    %11 = vector.load %arg2[%c1, %c0_7, %c0_8] : memref<9x4x128xf32, #tpu.memory_space<vmem>>, vector<1x4x128xf32>
    %12 = vector.shape_cast %11 : vector<1x4x128xf32> to vector<4x128xf32>
    %cst_9 = arith.constant dense<0.000000e+00> : vector<256x128xf32>
    %13 = tpu.matmul %10, %12, %cst_9 {dimension_numbers = #tpu.dot_dimension_numbers<[1], [0], [0], [1], [0, 0, 1, 1], [], []>} : vector<256x4xf32>, vector<4x128xf32>, vector<256x128xf32> -> vector<256x128xf32>
    %14 = arith.addf %8, %13 : vector<256x128xf32>
    %15 = vector.extract_strided_slice %1 {offsets = [0, 2, 0], sizes = [16, 16, 4], strides = [1, 1, 1]} : vector<18x18x4xf32> to vector<16x16x4xf32>
    %16 = vector.shape_cast %15 : vector<16x16x4xf32> to vector<256x4xf32>
    %c2 = arith.constant 2 : index
    %c0_10 = arith.constant 0 : index
    %c0_11 = arith.constant 0 : index
    %17 = vector.load %arg2[%c2, %c0_10, %c0_11] : memref<9x4x128xf32, #tpu.memory_space<vmem>>, vector<1x4x128xf32>
    %18 = vector.shape_cast %17 : vector<1x4x128xf32> to vector<4x128xf32>
    %cst_12 = arith.constant dense<0.000000e+00> : vector<256x128xf32>
    %19 = tpu.matmul %16, %18, %cst_12 {dimension_numbers = #tpu.dot_dimension_numbers<[1], [0], [0], [1], [0, 0, 1, 1], [], []>} : vector<256x4xf32>, vector<4x128xf32>, vector<256x128xf32> -> vector<256x128xf32>
    %20 = arith.addf %14, %19 : vector<256x128xf32>
    %21 = vector.extract_strided_slice %1 {offsets = [1, 0, 0], sizes = [16, 16, 4], strides = [1, 1, 1]} : vector<18x18x4xf32> to vector<16x16x4xf32>
    %22 = vector.shape_cast %21 : vector<16x16x4xf32> to vector<256x4xf32>
    %c3 = arith.constant 3 : index
    %c0_13 = arith.constant 0 : index
    %c0_14 = arith.constant 0 : index
    %23 = vector.load %arg2[%c3, %c0_13, %c0_14] : memref<9x4x128xf32, #tpu.memory_space<vmem>>, vector<1x4x128xf32>
    %24 = vector.shape_cast %23 : vector<1x4x128xf32> to vector<4x128xf32>
    %cst_15 = arith.constant dense<0.000000e+00> : vector<256x128xf32>
    %25 = tpu.matmul %22, %24, %cst_15 {dimension_numbers = #tpu.dot_dimension_numbers<[1], [0], [0], [1], [0, 0, 1, 1], [], []>} : vector<256x4xf32>, vector<4x128xf32>, vector<256x128xf32> -> vector<256x128xf32>
    %26 = arith.addf %20, %25 : vector<256x128xf32>
    %27 = vector.extract_strided_slice %1 {offsets = [1, 1, 0], sizes = [16, 16, 4], strides = [1, 1, 1]} : vector<18x18x4xf32> to vector<16x16x4xf32>
    %28 = vector.shape_cast %27 : vector<16x16x4xf32> to vector<256x4xf32>
    %c4 = arith.constant 4 : index
    %c0_16 = arith.constant 0 : index
    %c0_17 = arith.constant 0 : index
    %29 = vector.load %arg2[%c4, %c0_16, %c0_17] : memref<9x4x128xf32, #tpu.memory_space<vmem>>, vector<1x4x128xf32>
    %30 = vector.shape_cast %29 : vector<1x4x128xf32> to vector<4x128xf32>
    %cst_18 = arith.constant dense<0.000000e+00> : vector<256x128xf32>
    %31 = tpu.matmul %28, %30, %cst_18 {dimension_numbers = #tpu.dot_dimension_numbers<[1], [0], [0], [1], [0, 0, 1, 1], [], []>} : vector<256x4xf32>, vector<4x128xf32>, vector<256x128xf32> -> vector<256x128xf32>
    %32 = arith.addf %26, %31 : vector<256x128xf32>
    %33 = vector.extract_strided_slice %1 {offsets = [1, 2, 0], sizes = [16, 16, 4], strides = [1, 1, 1]} : vector<18x18x4xf32> to vector<16x16x4xf32>
    %34 = vector.shape_cast %33 : vector<16x16x4xf32> to vector<256x4xf32>
    %c5 = arith.constant 5 : index
    %c0_19 = arith.constant 0 : index
    %c0_20 = arith.constant 0 : index
    %35 = vector.load %arg2[%c5, %c0_19, %c0_20] : memref<9x4x128xf32, #tpu.memory_space<vmem>>, vector<1x4x128xf32>
    %36 = vector.shape_cast %35 : vector<1x4x128xf32> to vector<4x128xf32>
    %cst_21 = arith.constant dense<0.000000e+00> : vector<256x128xf32>
    %37 = tpu.matmul %34, %36, %cst_21 {dimension_numbers = #tpu.dot_dimension_numbers<[1], [0], [0], [1], [0, 0, 1, 1], [], []>} : vector<256x4xf32>, vector<4x128xf32>, vector<256x128xf32> -> vector<256x128xf32>
    %38 = arith.addf %32, %37 : vector<256x128xf32>
    %39 = vector.extract_strided_slice %1 {offsets = [2, 0, 0], sizes = [16, 16, 4], strides = [1, 1, 1]} : vector<18x18x4xf32> to vector<16x16x4xf32>
    %40 = vector.shape_cast %39 : vector<16x16x4xf32> to vector<256x4xf32>
    %c6 = arith.constant 6 : index
    %c0_22 = arith.constant 0 : index
    %c0_23 = arith.constant 0 : index
    %41 = vector.load %arg2[%c6, %c0_22, %c0_23] : memref<9x4x128xf32, #tpu.memory_space<vmem>>, vector<1x4x128xf32>
    %42 = vector.shape_cast %41 : vector<1x4x128xf32> to vector<4x128xf32>
    %cst_24 = arith.constant dense<0.000000e+00> : vector<256x128xf32>
    %43 = tpu.matmul %40, %42, %cst_24 {dimension_numbers = #tpu.dot_dimension_numbers<[1], [0], [0], [1], [0, 0, 1, 1], [], []>} : vector<256x4xf32>, vector<4x128xf32>, vector<256x128xf32> -> vector<256x128xf32>
    %44 = arith.addf %38, %43 : vector<256x128xf32>
    %45 = vector.extract_strided_slice %1 {offsets = [2, 1, 0], sizes = [16, 16, 4], strides = [1, 1, 1]} : vector<18x18x4xf32> to vector<16x16x4xf32>
    %46 = vector.shape_cast %45 : vector<16x16x4xf32> to vector<256x4xf32>
    %c7 = arith.constant 7 : index
    %c0_25 = arith.constant 0 : index
    %c0_26 = arith.constant 0 : index
    %47 = vector.load %arg2[%c7, %c0_25, %c0_26] : memref<9x4x128xf32, #tpu.memory_space<vmem>>, vector<1x4x128xf32>
    %48 = vector.shape_cast %47 : vector<1x4x128xf32> to vector<4x128xf32>
    %cst_27 = arith.constant dense<0.000000e+00> : vector<256x128xf32>
    %49 = tpu.matmul %46, %48, %cst_27 {dimension_numbers = #tpu.dot_dimension_numbers<[1], [0], [0], [1], [0, 0, 1, 1], [], []>} : vector<256x4xf32>, vector<4x128xf32>, vector<256x128xf32> -> vector<256x128xf32>
    %50 = arith.addf %44, %49 : vector<256x128xf32>
    %51 = vector.extract_strided_slice %1 {offsets = [2, 2, 0], sizes = [16, 16, 4], strides = [1, 1, 1]} : vector<18x18x4xf32> to vector<16x16x4xf32>
    %52 = vector.shape_cast %51 : vector<16x16x4xf32> to vector<256x4xf32>
    %c8 = arith.constant 8 : index
    %c0_28 = arith.constant 0 : index
    %c0_29 = arith.constant 0 : index
    %53 = vector.load %arg2[%c8, %c0_28, %c0_29] : memref<9x4x128xf32, #tpu.memory_space<vmem>>, vector<1x4x128xf32>
    %54 = vector.shape_cast %53 : vector<1x4x128xf32> to vector<4x128xf32>
    %cst_30 = arith.constant dense<0.000000e+00> : vector<256x128xf32>
    %55 = tpu.matmul %52, %54, %cst_30 {dimension_numbers = #tpu.dot_dimension_numbers<[1], [0], [0], [1], [0, 0, 1, 1], [], []>} : vector<256x4xf32>, vector<4x128xf32>, vector<256x128xf32> -> vector<256x128xf32>
    %56 = arith.addf %50, %55 : vector<256x128xf32>
    %c0_31 = arith.constant 0 : index
    %c0_32 = arith.constant 0 : index
    %57 = vector.load %arg3[%c0_31, %c0_32] : memref<1x128xf32, #tpu.memory_space<vmem>>, vector<1x128xf32>
    %58 = vector.broadcast %57 : vector<1x128xf32> to vector<256x128xf32>
    %59 = arith.addf %56, %58 : vector<256x128xf32>
    %cst_33 = arith.constant 0.000000e+00 : f32
    %60 = vector.broadcast %cst_33 : f32 to vector<256x128xf32>
    %61 = arith.maximumf %59, %60 : vector<256x128xf32>
    %c0_34 = arith.constant 0 : index
    %c0_35 = arith.constant 0 : index
    %c0_36 = arith.constant 0 : index
    %62 = vector.load %arg4[%c0_34, %c0_35, %c0_36] : memref<1x256x128xf32, #tpu.memory_space<vmem>>, vector<1x256x128xf32>
    %63 = vector.shape_cast %62 : vector<1x256x128xf32> to vector<256x128xf32>
    %64 = vector.shape_cast %61 : vector<256x128xf32> to vector<1x256x128xf32>
    tpu.vector_store %arg4[%c0_34, %c0_35, %c0_36], %64 {strides = array<i32>} : memref<1x256x128xf32, #tpu.memory_space<vmem>>, vector<1x256x128xf32>,
    return
  }
  func.func @transform_0(%arg0: i32) -> (i32, i32, i32, i32) {
    %c0_i32 = arith.constant 0 : i32
    %c0_i32_0 = arith.constant 0 : i32
    %c0_i32_1 = arith.constant 0 : i32
    %c0_i32_2 = arith.constant 0 : i32
    return %arg0, %c0_i32, %c0_i32_0, %c0_i32_1 : i32, i32, i32, i32
  }
  func.func @transform_1(%arg0: i32) -> (i32, i32, i32) {
    %c0_i32 = arith.constant 0 : i32
    %c0_i32_0 = arith.constant 0 : i32
    %c0_i32_1 = arith.constant 0 : i32
    %c0_i32_2 = arith.constant 0 : i32
    return %c0_i32, %c0_i32_0, %c0_i32_1 : i32, i32, i32
  }
  func.func @transform_2(%arg0: i32) -> (i32, i32) {
    %c0_i32 = arith.constant 0 : i32
    %c0_i32_0 = arith.constant 0 : i32
    %c0_i32_1 = arith.constant 0 : i32
    return %c0_i32, %c0_i32_0 : i32, i32
  }
  func.func @transform_3(%arg0: i32) -> (i32, i32, i32) {
    %c0_i32 = arith.constant 0 : i32
    %c0_i32_0 = arith.constant 0 : i32
    %c0_i32_1 = arith.constant 0 : i32
    return %arg0, %c0_i32, %c0_i32_0 : i32, i32, i32
  }
}

</mosaic_0001>

<llo_original>
// kernel: tpu_custom_call.1
$region0: #{tpu_custom_call.1}
  #allocation0 [shape = 'u32[]', space=smem, size = 0x4, offset = 0x4, fixed_abs, tag = 'smem constant byte address 0x4 - core index']
  #allocation1 [shape = 'u32[144,128]{1,0:T(1,128)}', space=vmem, size = 0x12000, scoped, tag = 'internal scratch']
  %s0 = inlined_call_operand.vmem [shape: f32[2,18,18,4], index: 0, kind: input, shape index: {}]
  %s1 = inlined_call_operand.vmem [shape: f32[9,4,128], index: 1, kind: input, shape index: {}]
  %s2 = inlined_call_operand.vmem [shape: f32[1,128], index: 2, kind: input, shape index: {}]
  %s3 = inlined_call_operand.hbm [shape: f32[2,256,128], index: 3, kind: output, shape index: {}]
  %s4 = sld [smem:[#allocation0]]
  $region45: #{tpu_custom_call.1} parent=0
    _
  %s6 = ssub.s32 1, %s4
  %s7 = scalar_select 0, %s6, %s4
  $region1: #{tpu_custom_call.1} parent=0
    #allocation2 [shape = 'u8[262144]{0}', space=vmem, size = 0x40000, scoped, tag = 'output window, operand 0']
    #allocation3 [shape = 's32[2]{0}', space=sflag, size = 0x8, scoped, tag = 'scoped memory for tpu_custom_call.1']
    %8 = vsyncpa [#allocation3], 0
    %s9 = scalar_lea.sflag [#allocation3], 1
    %10 = vsyncpa %s9, 0
    loop: start=0, step=1, limit=4
    $region2: #{tpu_custom_call.1} parent=1 // loop_pre_header
      _
    $region3: #{tpu_custom_call.1} parent=1 // loop_header
      %s12 = sphi 0, %s16
      %p13 = scmp.ge.s32.totalorder %s12, 4
      %s22 = sphi 0, %s24
      %s25 = sphi 0, %s22
      %s26 = sphi 0, %s25
      %s42 = sphi 0, %s26
      %s46 = sphi 0, %s46
      %s48 = sphi 0, %s46
      %s49 = sphi 0, %s48
      %s63 = sphi 0, %s49
      %s67 = sphi 0, %s67
      %s69 = sphi 0, %s67
      %s70 = sphi 0, %s69
      %s84 = sphi 0, %s70
      %s90 = sphi 0, %s92
      %s93 = sphi 0, %s90
      %s94 = sphi 0, %s93
      %s110 = sphi 0, %s94
    $region4: #{tpu_custom_call.1} parent=1 // loop_header_branch
      %15 = sbr.rel (%p13) target = $region8
    $region5: #{tpu_custom_call.1} parent=1 // loop_body
      %s17 = ssub.s32 %s12, 1
      %s18 = ssub.s32 %s12, 2
      %s19 = sadd.s32 %s12, 1
      %s20 = ssub.s32 %s12, %s19
      %p21 = scmp.eq.s32.totalorder %s20, 0
      %s23 = sadd.s32 %s22, 1
      %s24 = scalar_select %p21, %s22, %s23
      %p27 = pneg %p21
      %p28 = scmp.eq.s32.totalorder %s12, 1
      %p29 = por %p27, %p28
      %p30 = scmp.ne.s32.totalorder %s22, %s25
      %p31 = scmp.eq.s32.totalorder %s12, 0
      %p32 = por %p30, %p31
      %p33 = scmp.ne.s32.totalorder %s22, %s25
      %p34 = scmp.eq.s32.totalorder %s17, 1
      %p35 = por %p33, %p34
      %p36 = scmp.ne.s32.totalorder %s25, %s26
      %p37 = scmp.eq.s32.totalorder %s17, 0
      %p38 = por %p36, %p37
      %p39 = scmp.ne.s32.totalorder %s25, %s26
      %p40 = scmp.eq.s32.totalorder %s18, 1
      %p41 = por %p39, %p40
      %p43 = scmp.ne.s32.totalorder %s26, %s42
      %p44 = scmp.eq.s32.totalorder %s18, 0
      %p45 = por %p43, %p44
      %s47 = sadd.s32 %s46, 1
      %p50 = scmp.eq.s32.totalorder %s12, 1
      %p51 = scmp.ne.s32.totalorder %s46, %s48
      %p52 = scmp.eq.s32.totalorder %s12, 0
      %p53 = por %p51, %p52
      %p54 = scmp.ne.s32.totalorder %s46, %s48
      %p55 = scmp.eq.s32.totalorder %s17, 1
      %p56 = por %p54, %p55
      %p57 = scmp.ne.s32.totalorder %s48, %s49
      %p58 = scmp.eq.s32.totalorder %s17, 0
      %p59 = por %p57, %p58
      %p60 = scmp.ne.s32.totalorder %s48, %s49
      %p61 = scmp.eq.s32.totalorder %s18, 1
      %p62 = por %p60, %p61
      %p64 = scmp.ne.s32.totalorder %s49, %s63
      %p65 = scmp.eq.s32.totalorder %s18, 0
      %p66 = por %p64, %p65
      %s68 = sadd.s32 %s67, 1
      %p71 = scmp.eq.s32.totalorder %s12, 1
      %p72 = scmp.ne.s32.totalorder %s67, %s69
      %p73 = scmp.eq.s32.totalorder %s12, 0
      %p74 = por %p72, %p73
      %p75 = scmp.ne.s32.totalorder %s67, %s69
      %p76 = scmp.eq.s32.totalorder %s17, 1
      %p77 = por %p75, %p76
      %p78 = scmp.ne.s32.totalorder %s69, %s70
      %p79 = scmp.eq.s32.totalorder %s17, 0
      %p80 = por %p78, %p79
      %p81 = scmp.ne.s32.totalorder %s69, %s70
      %p82 = scmp.eq.s32.totalorder %s18, 1
      %p83 = por %p81, %p82
      %p85 = scmp.ne.s32.totalorder %s70, %s84
      %p86 = scmp.eq.s32.totalorder %s18, 0
      %p87 = por %p85, %p86
      %s88 = ssub.s32 %s12, %s19
      %p89 = scmp.eq.s32.totalorder %s88, 0
      %s91 = sadd.s32 %s90, 1
      %s92 = scalar_select %p89, %s90, %s91
      %p95 = pneg %p89
      %p96 = scmp.eq.s32.totalorder %s12, 1
      %p97 = por %p95, %p96
      %p98 = scmp.ne.s32.totalorder %s90, %s93
      %p99 = scmp.eq.s32.totalorder %s12, 0
      %p100 = por %p98, %p99
      %p101 = scmp.ne.s32.totalorder %s90, %s93
      %p102 = scmp.eq.s32.totalorder %s17, 1
      %p103 = por %p101, %p102
      %p104 = scmp.ne.s32.totalorder %s93, %s94
      %p105 = scmp.eq.s32.totalorder %s17, 0
      %p106 = por %p104, %p105
      %p107 = scmp.ne.s32.totalorder %s93, %s94
      %p108 = scmp.eq.s32.totalorder %s18, 1
      %p109 = por %p107, %p108
      %p111 = scmp.ne.s32.totalorder %s94, %s110
      %p112 = scmp.eq.s32.totalorder %s18, 0
      %p113 = por %p111, %p112
      %p114 = scmp.le.s32.totalorder 1, %s12
      %p115 = scmp.lt.s32.totalorder %s12, 3
      %p116 = pnand %p114, %p115
      %p117 = pneg %p116
      // Predicated region
      $region9: #{tpu_custom_call.1} parent=5 // pred_check
        _
      $region10: #{tpu_custom_call.1} parent=5 // pred_check_branch
        %119 = sbr.rel (%p116) target = $region12
      $region11: #{tpu_custom_call.1} parent=5 // pred_region
        %s120 = ssub.s32 %s12, 1
        // Predicated region
        $region13: #{tpu_custom_call.1} parent=11 // pred_check
          %p121 = pneg %p59
        $region14: #{tpu_custom_call.1} parent=11 // pred_check_branch
          %123 = sbr.rel (%p121) target = $region16
        $region15: #{tpu_custom_call.1} parent=11 // pred_region
          _
        $region16: #{tpu_custom_call.1} parent=11 // pred_fallthru
          _
        // Predicated region
        $region17: #{tpu_custom_call.1} parent=11 // pred_check
          %p124 = pneg %p80
        $region18: #{tpu_custom_call.1} parent=11 // pred_check_branch
          %126 = sbr.rel (%p124) target = $region20
        $region19: #{tpu_custom_call.1} parent=11 // pred_region
          _
        $region20: #{tpu_custom_call.1} parent=11 // pred_fallthru
          _
      $region12: #{tpu_custom_call.1} parent=5 // pred_fallthru
        _
      %p127 = scmp.lt.s32.totalorder %s12, 2
      // Predicated region
      $region21: #{tpu_custom_call.1} parent=5 // pred_check
        %p128 = pneg %p127
      $region22: #{tpu_custom_call.1} parent=5 // pred_check_branch
        %130 = sbr.rel (%p128) target = $region24
      $region23: #{tpu_custom_call.1} parent=5 // pred_region
        // Predicated region
        $region25: #{tpu_custom_call.1} parent=23 // pred_check
          %p131 = pneg %p32
        $region26: #{tpu_custom_call.1} parent=23 // pred_check_branch
          %133 = sbr.rel (%p131) target = $region28
        $region27: #{tpu_custom_call.1} parent=23 // pred_region
          %p134 = scmp.lt.s32.totalorder %s12, 1
          %s135 = scalar_select %p134, %s12, 1
          %s136 = smul.addr %s135, 54
          %s137 = smul.addr %s136, 8
          %s138 = scalar_lea.vmem %s0, %s137
        $region28: #{tpu_custom_call.1} parent=23 // pred_fallthru
          _
      $region24: #{tpu_custom_call.1} parent=5 // pred_fallthru
        _
      %p139 = scmp.le.s32.totalorder 1, %s12
      %p140 = scmp.lt.s32.totalorder %s12, 3
      %p141 = pnand %p139, %p140
      %p142 = pneg %p141
      // Predicated region
      $region29: #{tpu_custom_call.1} parent=5 // pred_check
        _
      $region30: #{tpu_custom_call.1} parent=5 // pred_check_branch
        %144 = sbr.rel (%p141) target = $region32
      $region31: #{tpu_custom_call.1} parent=5 // pred_region
        %s145 = ssub.s32 %s12, 1
        %p146 = scmp.lt.s32.totalorder %s17, 1
        %s147 = scalar_select %p146, %s17, 1
        %s148 = smul.addr %s147, 54
        %s149 = smul.addr %s148, 8
        %s150 = scalar_lea.vmem %s0, %s149
        %p151 = pneg %p38
        %p152 = pneg %p35
        %p153 = pneg %p59
        %p154 = pneg %p56
        %p155 = pneg %p80
        %p156 = pneg %p77
        %p157 = pneg %p106
        %p158 = pneg %p103
        %s159 = sand.u32 %s93, 1
        %s160 = scalar_lea.sflag [#allocation3], %s159
        %s161 = sand.u32 %s93, 1
        %s162 = smul.addr %s161, 256
        %s163 = scalar_lea.vmem [#allocation2], %s162
        %p164 = scmp.lt.s32.totalorder %s17, 1
        %s165 = scalar_select %p164, %s17, 1
        %s166 = smul.addr %s165, 54
        %s167 = smul.addr %s166, 8
        %s168 = scalar_lea.vmem %s0, %s167
        %v169 = vld [vmem:[%s168] sm:$0xff]
        %v170 = vld [vmem:[%s168 + $0x8] sm:$0xff]
        %v171 = vld [vmem:[%s168 + $0x10] sm:$0x3]
        %v172 = vld [vmem:[%s168 + $0x18] sm:$0xff]
        %v173 = vld [vmem:[%s168 + $0x20] sm:$0xff]
        %v174 = vld [vmem:[%s168 + $0x28] sm:$0x3]
        %v175 = vld [vmem:[%s168 + $0x30] sm:$0xff]
        %v176 = vld [vmem:[%s168 + $0x38] sm:$0xff]
        %v177 = vld [vmem:[%s168 + $0x40] sm:$0x3]
        %v178 = vld [vmem:[%s168 + $0x48] sm:$0xff]
        %v179 = vld [vmem:[%s168 + $0x50] sm:$0xff]
        %v180 = vld [vmem:[%s168 + $0x58] sm:$0x3]
        %v181 = vld [vmem:[%s168 + $0x60] sm:$0xff]
        %v182 = vld [vmem:[%s168 + $0x68] sm:$0xff]
        %v183 = vld [vmem:[%s168 + $0x70] sm:$0x3]
        %v184 = vld [vmem:[%s168 + $0x78] sm:$0xff]
        %v185 = vld [vmem:[%s168 + $0x80] sm:$0xff]
        %v186 = vld [vmem:[%s168 + $0x88] sm:$0x3]
        %v187 = vld [vmem:[%s168 + $0x90] sm:$0xff]
        %v188 = vld [vmem:[%s168 + $0x98] sm:$0xff]
        %v189 = vld [vmem:[%s168 + $0xa0] sm:$0x3]
        %v190 = vld [vmem:[%s168 + $0xa8] sm:$0xff]
        %v191 = vld [vmem:[%s168 + $0xb0] sm:$0xff]
        %v192 = vld [vmem:[%s168 + $0xb8] sm:$0x3]
        %v193 = vld [vmem:[%s168 + $0xc0] sm:$0xff]
        %v194 = vld [vmem:[%s168 + $0xc8] sm:$0xff]
        %v195 = vld [vmem:[%s168 + $0xd0] sm:$0x3]
        %v196 = vld [vmem:[%s168 + $0xd8] sm:$0xff]
        %v197 = vld [vmem:[%s168 + $0xe0] sm:$0xff]
        %v198 = vld [vmem:[%s168 + $0xe8] sm:$0x3]
        %v199 = vld [vmem:[%s168 + $0xf0] sm:$0xff]
        %v200 = vld [vmem:[%s168 + $0xf8] sm:$0xff]
        %v201 = vld [vmem:[%s168 + $0x100] sm:$0x3]
        %v202 = vld [vmem:[%s168 + $0x108] sm:$0xff]
        %v203 = vld [vmem:[%s168 + $0x110] sm:$0xff]
        %v204 = vld [vmem:[%s168 + $0x118] sm:$0x3]
        %v205 = vld [vmem:[%s168 + $0x120] sm:$0xff]
        %v206 = vld [vmem:[%s168 + $0x128] sm:$0xff]
        %v207 = vld [vmem:[%s168 + $0x130] sm:$0x3]
        %v208 = vld [vmem:[%s168 + $0x138] sm:$0xff]
        %v209 = vld [vmem:[%s168 + $0x140] sm:$0xff]
        %v210 = vld [vmem:[%s168 + $0x148] sm:$0x3]
        %v211 = vld [vmem:[%s168 + $0x150] sm:$0xff]
        %v212 = vld [vmem:[%s168 + $0x158] sm:$0xff]
        %v213 = vld [vmem:[%s168 + $0x160] sm:$0x3]
        %v214 = vld [vmem:[%s168 + $0x168] sm:$0xff]
        %v215 = vld [vmem:[%s168 + $0x170] sm:$0xff]
        %v216 = vld [vmem:[%s168 + $0x178] sm:$0x3]
        %v217 = vld [vmem:[%s168 + $0x180] sm:$0xff]
        %v218 = vld [vmem:[%s168 + $0x188] sm:$0xff]
        %v219 = vld [vmem:[%s168 + $0x190] sm:$0x3]
        %v220 = vld [vmem:[%s168 + $0x198] sm:$0xff]
        %v221 = vld [vmem:[%s168 + $0x1a0] sm:$0xff]
        %v222 = vld [vmem:[%s168 + $0x1a8] sm:$0x3]
        %v223 = vld [vmem:[%s1] sm:$0xf]
        %vm272 = vcmask 1046528
        %v273 = vrot.slane %v169, 1
        %v274 = vrot.slane %v170, 1
        %v275 = vsel %vm272, %v273, %v274
        %v276 = vrot.slane %v171, 1
        %v277 = vsel %vm272, %v274, %v276
        %v278 = vrot.slane %v172, 1
        %v279 = vrot.slane %v173, 1
        %v280 = vsel %vm272, %v278, %v279
        %v281 = vrot.slane %v174, 1
        %v282 = vsel %vm272, %v279, %v281
        %v283 = vrot.slane %v175, 1
        %v284 = vrot.slane %v176, 1
        %v285 = vsel %vm272, %v283, %v284
        %v286 = vrot.slane %v177, 1
        %v287 = vsel %vm272, %v284, %v286
        %v288 = vrot.slane %v178, 1
        %v289 = vrot.slane %v179, 1
        %v290 = vsel %vm272, %v288, %v289
        %v291 = vrot.slane %v180, 1
        %v292 = vsel %vm272, %v289, %v291
        %v293 = vrot.slane %v181, 1
        %v294 = vrot.slane %v182, 1
        %v295 = vsel %vm272, %v293, %v294
        %v296 = vrot.slane %v183, 1
        %v297 = vsel %vm272, %v294, %v296
        %v298 = vrot.slane %v184, 1
        %v299 = vrot.slane %v185, 1
        %v300 = vsel %vm272, %v298, %v299
        %v301 = vrot.slane %v186, 1
        %v302 = vsel %vm272, %v299, %v301
        %v303 = vrot.slane %v187, 1
        %v304 = vrot.slane %v188, 1
        %v305 = vsel %vm272, %v303, %v304
        %v306 = vrot.slane %v189, 1
        %v307 = vsel %vm272, %v304, %v306
        %v308 = vrot.slane %v190, 1
        %v309 = vrot.slane %v191, 1
        %v310 = vsel %vm272, %v308, %v309
        %v311 = vrot.slane %v192, 1
        %v312 = vsel %vm272, %v309, %v311
        %v313 = vrot.slane %v193, 1
        %v314 = vrot.slane %v194, 1
        %v315 = vsel %vm272, %v313, %v314
        %v316 = vrot.slane %v195, 1
        %v317 = vsel %vm272, %v314, %v316
        %v318 = vrot.slane %v196, 1
        %v319 = vrot.slane %v197, 1
        %v320 = vsel %vm272, %v318, %v319
        %v321 = vrot.slane %v198, 1
        %v322 = vsel %vm272, %v319, %v321
        %v323 = vrot.slane %v199, 1
        %v324 = vrot.slane %v200, 1
        %v325 = vsel %vm272, %v323, %v324
        %v326 = vrot.slane %v201, 1
        %v327 = vsel %vm272, %v324, %v326
        %v328 = vrot.slane %v202, 1
        %v329 = vrot.slane %v203, 1
        %v330 = vsel %vm272, %v328, %v329
        %v331 = vrot.slane %v204, 1
        %v332 = vsel %vm272, %v329, %v331
        %v333 = vrot.slane %v205, 1
        %v334 = vrot.slane %v206, 1
        %v335 = vsel %vm272, %v333, %v334
        %v336 = vrot.slane %v207, 1
        %v337 = vsel %vm272, %v334, %v336
        %v338 = vrot.slane %v208, 1
        %v339 = vrot.slane %v209, 1
        %v340 = vsel %vm272, %v338, %v339
        %v341 = vrot.slane %v210, 1
        %v342 = vsel %vm272, %v339, %v341
        %v343 = vrot.slane %v211, 1
        %v344 = vrot.slane %v212, 1
        %v345 = vsel %vm272, %v343, %v344
        %v346 = vrot.slane %v213, 1
        %v347 = vsel %vm272, %v344, %v346
        %v348 = vrot.slane %v214, 1
        %v349 = vrot.slane %v215, 1
        %v350 = vsel %vm272, %v348, %v349
        %v351 = vrot.slane %v216, 1
        %v352 = vsel %vm272, %v349, %v351
        %s353 = scalar_lea.vmem %s1, 4
        %v354 = vld [vmem:[%s353] sm:$0xf]
        %vm355 = vcmask 31744
        %v356 = vsel %vm355, %v275, 0
        %v358 = vsel %vm355, %v277, 0
        %v360 = vsel %vm355, %v280, 0
        %v362 = vsel %vm355, %v282, 0
        %v364 = vsel %vm355, %v285, 0
        %v366 = vsel %vm355, %v287, 0
        %v368 = vsel %vm355, %v290, 0
        %v370 = vsel %vm355, %v292, 0
        %v372 = vsel %vm355, %v295, 0
        %v374 = vsel %vm355, %v297, 0
        %v376 = vsel %vm355, %v300, 0
        %v378 = vsel %vm355, %v302, 0
        %v380 = vsel %vm355, %v305, 0
        %v382 = vsel %vm355, %v307, 0
        %v384 = vsel %vm355, %v310, 0
        %v386 = vsel %vm355, %v312, 0
        %v388 = vsel %vm355, %v315, 0
        %v390 = vsel %vm355, %v317, 0
        %v392 = vsel %vm355, %v320, 0
        %v394 = vsel %vm355, %v322, 0
        %v396 = vsel %vm355, %v325, 0
        %v398 = vsel %vm355, %v327, 0
        %v400 = vsel %vm355, %v330, 0
        %v402 = vsel %vm355, %v332, 0
        %v404 = vsel %vm355, %v335, 0
        %v406 = vsel %vm355, %v337, 0
        %v408 = vsel %vm355, %v340, 0
        %v410 = vsel %vm355, %v342, 0
        %v412 = vsel %vm355, %v345, 0
        %v414 = vsel %vm355, %v347, 0
        %v416 = vsel %vm355, %v350, 0
        %v418 = vsel %vm355, %v352, 0
        %vm420 = vcmask 1043456
        %v422 = vsel %vm420, %v354, 0
        %424 = vmatprep.subr.mxu0 0.0
        %425 = vmatpush1.msra.mxu0 0.0
        %426 = vmatprep.subr.mxu0 0.0
        %427 = vmatpush1.msra.mxu0 0.0
        %428 = vmatprep.subr.mxu0 0.0
        %429 = vmatpush1.msra.mxu0 0.0
        %430 = vmatprep.subr.mxu0 0.0
        %431 = vmatpush1.msra.mxu0 0.0
        %432 = vmatprep.subr.mxu0 0.0
        %433 = vmatpush1.msra.mxu0 0.0
        %434 = vmatprep.subr.mxu0 0.0
        %435 = vmatpush1.msra.mxu0 0.0
        %436 = vmatprep.subr.mxu0 0.0
        %437 = vmatpush1.msra.mxu0 0.0
        %438 = vmatprep.subr.mxu0 0.0
        %439 = vmatpush1.msra.mxu0 0.0
        %440 = vmatprep.subr.mxu0 0.0
        %441 = vmatpush1.msra.mxu0 0.0
        %442 = vmatprep.subr.mxu0 0.0
        %443 = vmatpush1.msra.mxu0 0.0
        %444 = vmatprep.subr.mxu0 0.0
        %445 = vmatpush1.msra.mxu0 0.0
        %446 = vmatprep.subr.mxu0 0.0
        %447 = vmatpush1.msra.mxu0 0.0
        %448 = vmatprep.subr.mxu0 0.0
        %449 = vmatpush1.msra.mxu0 0.0
        %450 = vmatprep.subr.mxu0 0.0
        %451 = vmatpush1.msra.mxu0 0.0
        %452 = vmatprep.subr.mxu0 0.0
        %453 = vmatpush1.msra.mxu0 0.0
        %454 = vmatprep.subr.mxu0 0.0
        %455 = vmatpush1.msra.mxu0 %v422
        %456 = vmatprep.subr.mxu0 0.0
        %457 = vmatpush2.msra.mxu0 0.0
        %458 = vmatprep.subr.mxu0 0.0
        %459 = vmatpush2.msra.mxu0 0.0
        %460 = vmatprep.subr.mxu0 0.0
        %461 = vmatpush2.msra.mxu0 0.0
        %462 = vmatprep.subr.mxu0 0.0
        %463 = vmatpush2.msra.mxu0 0.0
        %464 = vmatprep.subr.mxu0 0.0
        %465 = vmatpush2.msra.mxu0 0.0
        %466 = vmatprep.subr.mxu0 0.0
        %467 = vmatpush2.msra.mxu0 0.0
        %468 = vmatprep.subr.mxu0 0.0
        %469 = vmatpush2.msra.mxu0 0.0
        %470 = vmatprep.subr.mxu0 0.0
        %471 = vmatpush2.msra.mxu0 0.0
        %472 = vmatprep.subr.mxu0 0.0
        %473 = vmatpush2.msra.mxu0 0.0
        %474 = vmatprep.subr.mxu0 0.0
        %475 = vmatpush2.msra.mxu0 0.0
        %476 = vmatprep.subr.mxu0 0.0
        %477 = vmatpush2.msra.mxu0 0.0
        %478 = vmatprep.subr.mxu0 0.0
        %479 = vmatpush2.msra.mxu0 0.0
        %480 = vmatprep.subr.mxu0 0.0
        %481 = vmatpush2.msra.mxu0 0.0
        %482 = vmatprep.subr.mxu0 0.0
        %483 = vmatpush2.msra.mxu0 0.0
        %484 = vmatprep.subr.mxu0 0.0
        %485 = vmatpush2.msra.mxu0 0.0
        %486 = vmatprep.subr.mxu0 0.0
        %487 = vmatpush2.msra.mxu0 0.0
        %488 = vmatprep.mubr.f32.mxu0 0.0
        %489 = vmatmul.mubr.f32.gmra.mxu0 %v356
        %v490 = vpop.f32.mrf.mxu0
        %v491 = vadd.f32 0.0, %v490
        %v492 = vpop.f32.mrf.mxu0
        %493 = vmatprep.mubr.f32.mxu0 0.0
        %494 = vmatmul.mubr.f32.gmra.mxu0 %v358
        %v495 = vpop.f32.mrf.mxu0
        %v496 = vadd.f32 0.0, %v495
        %v497 = vpop.f32.mrf.mxu0
        %498 = vmatprep.mubr.f32.mxu0 0.0
        %499 = vmatmul.mubr.f32.gmra.mxu0 %v360
        %v500 = vpop.f32.mrf.mxu0
        %v501 = vadd.f32 0.0, %v500
        %v502 = vpop.f32.mrf.mxu0
        %503 = vmatprep.mubr.f32.mxu0 0.0
        %504 = vmatmul.mubr.f32.gmra.mxu0 %v362
        %v505 = vpop.f32.mrf.mxu0
        %v506 = vadd.f32 0.0, %v505
        %v507 = vpop.f32.mrf.mxu0
        %508 = vmatprep.mubr.f32.mxu0 0.0
        %509 = vmatmul.mubr.f32.gmra.mxu0 %v364
        %v510 = vpop.f32.mrf.mxu0
        %v511 = vadd.f32 0.0, %v510
        %v512 = vpop.f32.mrf.mxu0
        %513 = vmatprep.mubr.f32.mxu0 0.0
        %514 = vmatmul.mubr.f32.gmra.mxu0 %v366
        %v515 = vpop.f32.mrf.mxu0
        %v516 = vadd.f32 0.0, %v515
        %v517 = vpop.f32.mrf.mxu0
        %518 = vmatprep.mubr.f32.mxu0 0.0
        %519 = vmatmul.mubr.f32.gmra.mxu0 %v368
        %v520 = vpop.f32.mrf.mxu0
        %v521 = vadd.f32 0.0, %v520
        %v522 = vpop.f32.mrf.mxu0
        %523 = vmatprep.mubr.f32.mxu0 0.0
        %524 = vmatmul.mubr.f32.gmra.mxu0 %v370
        %v525 = vpop.f32.mrf.mxu0
        %v526 = vadd.f32 0.0, %v525
        %v527 = vpop.f32.mrf.mxu0
        %528 = vmatprep.mubr.f32.mxu0 0.0
        %529 = vmatmul.mubr.f32.gmra.mxu0 %v372
        %v530 = vpop.f32.mrf.mxu0
        %v531 = vadd.f32 0.0, %v530
        %v532 = vpop.f32.mrf.mxu0
        %533 = vmatprep.mubr.f32.mxu0 0.0
        %534 = vmatmul.mubr.f32.gmra.mxu0 %v374
        %v535 = vpop.f32.mrf.mxu0
        %v536 = vadd.f32 0.0, %v535
        %v537 = vpop.f32.mrf.mxu0
        %538 = vmatprep.mubr.f32.mxu0 0.0
        %539 = vmatmul.mubr.f32.gmra.mxu0 %v376
        %v540 = vpop.f32.mrf.mxu0
        %v541 = vadd.f32 0.0, %v540
        %v542 = vpop.f32.mrf.mxu0
        %543 = vmatprep.mubr.f32.mxu0 0.0
        %544 = vmatmul.mubr.f32.gmra.mxu0 %v378
        %v545 = vpop.f32.mrf.mxu0
        %v546 = vadd.f32 0.0, %v545
        %v547 = vpop.f32.mrf.mxu0
        %548 = vmatprep.mubr.f32.mxu0 0.0
        %549 = vmatmul.mubr.f32.gmra.mxu0 %v380
        %v550 = vpop.f32.mrf.mxu0
        %v551 = vadd.f32 0.0, %v550
        %v552 = vpop.f32.mrf.mxu0
        %553 = vmatprep.mubr.f32.mxu0 0.0
        %554 = vmatmul.mubr.f32.gmra.mxu0 %v382
        %v555 = vpop.f32.mrf.mxu0
        %v556 = vadd.f32 0.0, %v555
        %v557 = vpop.f32.mrf.mxu0
        %558 = vmatprep.mubr.f32.mxu0 0.0
        %559 = vmatmul.mubr.f32.gmra.mxu0 %v384
        %v560 = vpop.f32.mrf.mxu0
        %v561 = vadd.f32 0.0, %v560
        %v562 = vpop.f32.mrf.mxu0
        %563 = vmatprep.mubr.f32.mxu0 0.0
        %564 = vmatmul.mubr.f32.gmra.mxu0 %v386
        %v565 = vpop.f32.mrf.mxu0
        %v566 = vadd.f32 0.0, %v565
        %v567 = vpop.f32.mrf.mxu0
        %568 = vmatprep.mubr.f32.mxu0 0.0
        %569 = vmatmul.mubr.f32.gmra.mxu0 %v388
        %v570 = vpop.f32.mrf.mxu0
        %v571 = vadd.f32 0.0, %v570
        %v572 = vpop.f32.mrf.mxu0
        %573 = vmatprep.mubr.f32.mxu0 0.0
        %574 = vmatmul.mubr.f32.gmra.mxu0 %v390
        %v575 = vpop.f32.mrf.mxu0
        %v576 = vadd.f32 0.0, %v575
        %v577 = vpop.f32.mrf.mxu0
        %578 = vmatprep.mubr.f32.mxu0 0.0
        %579 = vmatmul.mubr.f32.gmra.mxu0 %v392
        %v580 = vpop.f32.mrf.mxu0
        %v581 = vadd.f32 0.0, %v580
        %v582 = vpop.f32.mrf.mxu0
        %583 = vmatprep.mubr.f32.mxu0 0.0
        %584 = vmatmul.mubr.f32.gmra.mxu0 %v394
        %v585 = vpop.f32.mrf.mxu0
        %v586 = vadd.f32 0.0, %v585
        %v587 = vpop.f32.mrf.mxu0
        %588 = vmatprep.mubr.f32.mxu0 0.0
        %589 = vmatmul.mubr.f32.gmra.mxu0 %v396
        %v590 = vpop.f32.mrf.mxu0
        %v591 = vadd.f32 0.0, %v590
        %v592 = vpop.f32.mrf.mxu0
        %593 = vmatprep.mubr.f32.mxu0 0.0
        %594 = vmatmul.mubr.f32.gmra.mxu0 %v398
        %v595 = vpop.f32.mrf.mxu0
        %v596 = vadd.f32 0.0, %v595
        %v597 = vpop.f32.mrf.mxu0
        %598 = vmatprep.mubr.f32.mxu0 0.0
        %599 = vmatmul.mubr.f32.gmra.mxu0 %v400
        %v600 = vpop.f32.mrf.mxu0
        %v601 = vadd.f32 0.0, %v600
        %v602 = vpop.f32.mrf.mxu0
        %603 = vmatprep.mubr.f32.mxu0 0.0
        %604 = vmatmul.mubr.f32.gmra.mxu0 %v402
        %v605 = vpop.f32.mrf.mxu0
        %v606 = vadd.f32 0.0, %v605
        %v607 = vpop.f32.mrf.mxu0
        %608 = vmatprep.mubr.f32.mxu0 0.0
        %609 = vmatmul.mubr.f32.gmra.mxu0 %v404
        %v610 = vpop.f32.mrf.mxu0
        %v611 = vadd.f32 0.0, %v610
        %v612 = vpop.f32.mrf.mxu0
        %613 = vmatprep.mubr.f32.mxu0 0.0
        %614 = vmatmul.mubr.f32.gmra.mxu0 %v406
        %v615 = vpop.f32.mrf.mxu0
        %v616 = vadd.f32 0.0, %v615
        %v617 = vpop.f32.mrf.mxu0
        %618 = vmatprep.mubr.f32.mxu0 0.0
        %619 = vmatmul.mubr.f32.gmra.mxu0 %v408
        %v620 = vpop.f32.mrf.mxu0
        %v621 = vadd.f32 0.0, %v620
        %v622 = vpop.f32.mrf.mxu0
        %623 = vmatprep.mubr.f32.mxu0 0.0
        %624 = vmatmul.mubr.f32.gmra.mxu0 %v410
        %v625 = vpop.f32.mrf.mxu0
        %v626 = vadd.f32 0.0, %v625
        %v627 = vpop.f32.mrf.mxu0
        %628 = vmatprep.mubr.f32.mxu0 0.0
        %629 = vmatmul.mubr.f32.gmra.mxu0 %v412
        %v630 = vpop.f32.mrf.mxu0
        %v631 = vadd.f32 0.0, %v630
        %v632 = vpop.f32.mrf.mxu0
        %633 = vmatprep.mubr.f32.mxu0 0.0
        %634 = vmatmul.mubr.f32.gmra.mxu0 %v414
        %v635 = vpop.f32.mrf.mxu0
        %v636 = vadd.f32 0.0, %v635
        %v637 = vpop.f32.mrf.mxu0
        %638 = vmatprep.mubr.f32.mxu0 0.0
        %639 = vmatmul.mubr.f32.gmra.mxu0 %v416
        %v640 = vpop.f32.mrf.mxu0
        %v641 = vadd.f32 0.0, %v640
        %v642 = vpop.f32.mrf.mxu0
        %643 = vmatprep.mubr.f32.mxu0 0.0
        %644 = vmatmul.mubr.f32.gmra.mxu0 %v418
        %v645 = vpop.f32.mrf.mxu0
        %v646 = vadd.f32 0.0, %v645
        %v647 = vpop.f32.mrf.mxu0
        %648 = vdwg.mxu0
        %v649 = vsel %vm355, %v169, 0
        %v651 = vsel %vm355, %v170, 0
        %v653 = vsel %vm355, %v172, 0
        %v655 = vsel %vm355, %v173, 0
        %v657 = vsel %vm355, %v175, 0
        %v659 = vsel %vm355, %v176, 0
        %v661 = vsel %vm355, %v178, 0
        %v663 = vsel %vm355, %v179, 0
        %v665 = vsel %vm355, %v181, 0
        %v667 = vsel %vm355, %v182, 0
        %v669 = vsel %vm355, %v184, 0
        %v671 = vsel %vm355, %v185, 0
        %v673 = vsel %vm355, %v187, 0
        %v675 = vsel %vm355, %v188, 0
        %v677 = vsel %vm355, %v190, 0
        %v679 = vsel %vm355, %v191, 0
        %v681 = vsel %vm355, %v193, 0
        %v683 = vsel %vm355, %v194, 0
        %v685 = vsel %vm355, %v196, 0
        %v687 = vsel %vm355, %v197, 0
        %v689 = vsel %vm355, %v199, 0
        %v691 = vsel %vm355, %v200, 0
        %v693 = vsel %vm355, %v202, 0
        %v695 = vsel %vm355, %v203, 0
        %v697 = vsel %vm355, %v205, 0
        %v699 = vsel %vm355, %v206, 0
        %v701 = vsel %vm355, %v208, 0
        %v703 = vsel %vm355, %v209, 0
        %v705 = vsel %vm355, %v211, 0
        %v707 = vsel %vm355, %v212, 0
        %v709 = vsel %vm355, %v214, 0
        %v711 = vsel %vm355, %v215, 0
        %v714 = vsel %vm420, %v223, 0
        %716 = vmatprep.subr.mxu0 0.0
        %717 = vmatpush1.msra.mxu0 0.0
        %718 = vmatprep.subr.mxu0 0.0
        %719 = vmatpush1.msra.mxu0 0.0
        %720 = vmatprep.subr.mxu0 0.0
        %721 = vmatpush1.msra.mxu0 0.0
        %722 = vmatprep.subr.mxu0 0.0
        %723 = vmatpush1.msra.mxu0 0.0
        %724 = vmatprep.subr.mxu0 0.0
        %725 = vmatpush1.msra.mxu0 0.0
        %726 = vmatprep.subr.mxu0 0.0
        %727 = vmatpush1.msra.mxu0 0.0
        %728 = vmatprep.subr.mxu0 0.0
        %729 = vmatpush1.msra.mxu0 0.0
        %730 = vmatprep.subr.mxu0 0.0
        %731 = vmatpush1.msra.mxu0 0.0
        %732 = vmatprep.subr.mxu0 0.0
        %733 = vmatpush1.msra.mxu0 0.0
        %734 = vmatprep.subr.mxu0 0.0
        %735 = vmatpush1.msra.mxu0 0.0
        %736 = vmatprep.subr.mxu0 0.0
        %737 = vmatpush1.msra.mxu0 0.0
        %738 = vmatprep.subr.mxu0 0.0
        %739 = vmatpush1.msra.mxu0 0.0
        %740 = vmatprep.subr.mxu0 0.0
        %741 = vmatpush1.msra.mxu0 0.0
        %742 = vmatprep.subr.mxu0 0.0
        %743 = vmatpush1.msra.mxu0 0.0
        %744 = vmatprep.subr.mxu0 0.0
        %745 = vmatpush1.msra.mxu0 0.0
        %746 = vmatprep.subr.mxu0 0.0
        %747 = vmatpush1.msra.mxu0 %v714
        %748 = vmatprep.subr.mxu0 0.0
        %749 = vmatpush2.msra.mxu0 0.0
        %750 = vmatprep.subr.mxu0 0.0
        %751 = vmatpush2.msra.mxu0 0.0
        %752 = vmatprep.subr.mxu0 0.0
        %753 = vmatpush2.msra.mxu0 0.0
        %754 = vmatprep.subr.mxu0 0.0
        %755 = vmatpush2.msra.mxu0 0.0
        %756 = vmatprep.subr.mxu0 0.0
        %757 = vmatpush2.msra.mxu0 0.0
        %758 = vmatprep.subr.mxu0 0.0
        %759 = vmatpush2.msra.mxu0 0.0
        %760 = vmatprep.subr.mxu0 0.0
        %761 = vmatpush2.msra.mxu0 0.0
        %762 = vmatprep.subr.mxu0 0.0
        %763 = vmatpush2.msra.mxu0 0.0
        %764 = vmatprep.subr.mxu0 0.0
        %765 = vmatpush2.msra.mxu0 0.0
        %766 = vmatprep.subr.mxu0 0.0
        %767 = vmatpush2.msra.mxu0 0.0
        %768 = vmatprep.subr.mxu0 0.0
        %769 = vmatpush2.msra.mxu0 0.0
        %770 = vmatprep.subr.mxu0 0.0
        %771 = vmatpush2.msra.mxu0 0.0
        %772 = vmatprep.subr.mxu0 0.0
        %773 = vmatpush2.msra.mxu0 0.0
        %774 = vmatprep.subr.mxu0 0.0
        %775 = vmatpush2.msra.mxu0 0.0
        %776 = vmatprep.subr.mxu0 0.0
        %777 = vmatpush2.msra.mxu0 0.0
        %778 = vmatprep.subr.mxu0 0.0
        %779 = vmatpush2.msra.mxu0 0.0
        %780 = vmatprep.mubr.f32.mxu0 0.0
        %781 = vmatmul.mubr.f32.gmra.mxu0 %v649
        %v782 = vpop.f32.mrf.mxu0
        %v783 = vadd.f32 %v491, %v782
        %v784 = vpop.f32.mrf.mxu0
        %785 = vmatprep.mubr.f32.mxu0 0.0
        %786 = vmatmul.mubr.f32.gmra.mxu0 %v651
        %v787 = vpop.f32.mrf.mxu0
        %v788 = vadd.f32 %v496, %v787
        %v789 = vpop.f32.mrf.mxu0
        %790 = vmatprep.mubr.f32.mxu0 0.0
        %791 = vmatmul.mubr.f32.gmra.mxu0 %v653
        %v792 = vpop.f32.mrf.mxu0
        %v793 = vadd.f32 %v501, %v792
        %v794 = vpop.f32.mrf.mxu0
        %795 = vmatprep.mubr.f32.mxu0 0.0
        %796 = vmatmul.mubr.f32.gmra.mxu0 %v655
        %v797 = vpop.f32.mrf.mxu0
        %v798 = vadd.f32 %v506, %v797
        %v799 = vpop.f32.mrf.mxu0
        %800 = vmatprep.mubr.f32.mxu0 0.0
        %801 = vmatmul.mubr.f32.gmra.mxu0 %v657
        %v802 = vpop.f32.mrf.mxu0
        %v803 = vadd.f32 %v511, %v802
        %v804 = vpop.f32.mrf.mxu0
        %805 = vmatprep.mubr.f32.mxu0 0.0
        %806 = vmatmul.mubr.f32.gmra.mxu0 %v659
        %v807 = vpop.f32.mrf.mxu0
        %v808 = vadd.f32 %v516, %v807
        %v809 = vpop.f32.mrf.mxu0
        %810 = vmatprep.mubr.f32.mxu0 0.0
        %811 = vmatmul.mubr.f32.gmra.mxu0 %v661
        %v812 = vpop.f32.mrf.mxu0
        %v813 = vadd.f32 %v521, %v812
        %v814 = vpop.f32.mrf.mxu0
        %815 = vmatprep.mubr.f32.mxu0 0.0
        %816 = vmatmul.mubr.f32.gmra.mxu0 %v663
        %v817 = vpop.f32.mrf.mxu0
        %v818 = vadd.f32 %v526, %v817
        %v819 = vpop.f32.mrf.mxu0
        %820 = vmatprep.mubr.f32.mxu0 0.0
        %821 = vmatmul.mubr.f32.gmra.mxu0 %v665
        %v822 = vpop.f32.mrf.mxu0
        %v823 = vadd.f32 %v531, %v822
        %v824 = vpop.f32.mrf.mxu0
        %825 = vmatprep.mubr.f32.mxu0 0.0
        %826 = vmatmul.mubr.f32.gmra.mxu0 %v667
        %v827 = vpop.f32.mrf.mxu0
        %v828 = vadd.f32 %v536, %v827
        %v829 = vpop.f32.mrf.mxu0
        %830 = vmatprep.mubr.f32.mxu0 0.0
        %831 = vmatmul.mubr.f32.gmra.mxu0 %v669
        %v832 = vpop.f32.mrf.mxu0
        %v833 = vadd.f32 %v541, %v832
        %v834 = vpop.f32.mrf.mxu0
        %835 = vmatprep.mubr.f32.mxu0 0.0
        %836 = vmatmul.mubr.f32.gmra.mxu0 %v671
        %v837 = vpop.f32.mrf.mxu0
        %v838 = vadd.f32 %v546, %v837
        %v839 = vpop.f32.mrf.mxu0
        %840 = vmatprep.mubr.f32.mxu0 0.0
        %841 = vmatmul.mubr.f32.gmra.mxu0 %v673
        %v842 = vpop.f32.mrf.mxu0
        %v843 = vadd.f32 %v551, %v842
        %v844 = vpop.f32.mrf.mxu0
        %845 = vmatprep.mubr.f32.mxu0 0.0
        %846 = vmatmul.mubr.f32.gmra.mxu0 %v675
        %v847 = vpop.f32.mrf.mxu0
        %v848 = vadd.f32 %v556, %v847
        %v849 = vpop.f32.mrf.mxu0
        %850 = vmatprep.mubr.f32.mxu0 0.0
        %851 = vmatmul.mubr.f32.gmra.mxu0 %v677
        %v852 = vpop.f32.mrf.mxu0
        %v853 = vadd.f32 %v561, %v852
        %v854 = vpop.f32.mrf.mxu0
        %855 = vmatprep.mubr.f32.mxu0 0.0
        %856 = vmatmul.mubr.f32.gmra.mxu0 %v679
        %v857 = vpop.f32.mrf.mxu0
        %v858 = vadd.f32 %v566, %v857
        %v859 = vpop.f32.mrf.mxu0
        %860 = vmatprep.mubr.f32.mxu0 0.0
        %861 = vmatmul.mubr.f32.gmra.mxu0 %v681
        %v862 = vpop.f32.mrf.mxu0
        %v863 = vadd.f32 %v571, %v862
        %v864 = vpop.f32.mrf.mxu0
        %865 = vmatprep.mubr.f32.mxu0 0.0
        %866 = vmatmul.mubr.f32.gmra.mxu0 %v683
        %v867 = vpop.f32.mrf.mxu0
        %v868 = vadd.f32 %v576, %v867
        %v869 = vpop.f32.mrf.mxu0
        %870 = vmatprep.mubr.f32.mxu0 0.0
        %871 = vmatmul.mubr.f32.gmra.mxu0 %v685
        %v872 = vpop.f32.mrf.mxu0
        %v873 = vadd.f32 %v581, %v872
        %v874 = vpop.f32.mrf.mxu0
        %875 = vmatprep.mubr.f32.mxu0 0.0
        %876 = vmatmul.mubr.f32.gmra.mxu0 %v687
        %v877 = vpop.f32.mrf.mxu0
        %v878 = vadd.f32 %v586, %v877
        %v879 = vpop.f32.mrf.mxu0
        %880 = vmatprep.mubr.f32.mxu0 0.0
        %881 = vmatmul.mubr.f32.gmra.mxu0 %v689
        %v882 = vpop.f32.mrf.mxu0
        %v883 = vadd.f32 %v591, %v882
        %v884 = vpop.f32.mrf.mxu0
        %885 = vmatprep.mubr.f32.mxu0 0.0
        %886 = vmatmul.mubr.f32.gmra.mxu0 %v691
        %v887 = vpop.f32.mrf.mxu0
        %v888 = vadd.f32 %v596, %v887
        %v889 = vpop.f32.mrf.mxu0
        %890 = vmatprep.mubr.f32.mxu0 0.0
        %891 = vmatmul.mubr.f32.gmra.mxu0 %v693
        %v892 = vpop.f32.mrf.mxu0
        %v893 = vadd.f32 %v601, %v892
        %v894 = vpop.f32.mrf.mxu0
        %895 = vmatprep.mubr.f32.mxu0 0.0
        %896 = vmatmul.mubr.f32.gmra.mxu0 %v695
        %v897 = vpop.f32.mrf.mxu0
        %v898 = vadd.f32 %v606, %v897
        %v899 = vpop.f32.mrf.mxu0
        %900 = vmatprep.mubr.f32.mxu0 0.0
        %901 = vmatmul.mubr.f32.gmra.mxu0 %v697
        %v902 = vpop.f32.mrf.mxu0
        %v903 = vadd.f32 %v611, %v902
        %v904 = vpop.f32.mrf.mxu0
        %905 = vmatprep.mubr.f32.mxu0 0.0
        %906 = vmatmul.mubr.f32.gmra.mxu0 %v699
        %v907 = vpop.f32.mrf.mxu0
        %v908 = vadd.f32 %v616, %v907
        %v909 = vpop.f32.mrf.mxu0
        %910 = vmatprep.mubr.f32.mxu0 0.0
        %911 = vmatmul.mubr.f32.gmra.mxu0 %v701
        %v912 = vpop.f32.mrf.mxu0
        %v913 = vadd.f32 %v621, %v912
        %v914 = vpop.f32.mrf.mxu0
        %915 = vmatprep.mubr.f32.mxu0 0.0
        %916 = vmatmul.mubr.f32.gmra.mxu0 %v703
        %v917 = vpop.f32.mrf.mxu0
        %v918 = vadd.f32 %v626, %v917
        %v919 = vpop.f32.mrf.mxu0
        %920 = vmatprep.mubr.f32.mxu0 0.0
        %921 = vmatmul.mubr.f32.gmra.mxu0 %v705
        %v922 = vpop.f32.mrf.mxu0
        %v923 = vadd.f32 %v631, %v922
        %v924 = vpop.f32.mrf.mxu0
        %925 = vmatprep.mubr.f32.mxu0 0.0
        %926 = vmatmul.mubr.f32.gmra.mxu0 %v707
        %v927 = vpop.f32.mrf.mxu0
        %v928 = vadd.f32 %v636, %v927
        %v929 = vpop.f32.mrf.mxu0
        %930 = vmatprep.mubr.f32.mxu0 0.0
        %931 = vmatmul.mubr.f32.gmra.mxu0 %v709
        %v932 = vpop.f32.mrf.mxu0
        %v933 = vadd.f32 %v641, %v932
        %v934 = vpop.f32.mrf.mxu0
        %935 = vmatprep.mubr.f32.mxu0 0.0
        %936 = vmatmul.mubr.f32.gmra.mxu0 %v711
        %v937 = vpop.f32.mrf.mxu0
        %v938 = vadd.f32 %v646, %v937
        %v939 = vpop.f32.mrf.mxu0
        %940 = vdwg.mxu0
        %vm941 = vcmask 1045504
        %v942 = vrot.slane %v169, 2
        %v943 = vrot.slane %v170, 2
        %v944 = vsel %vm941, %v942, %v943
        %v945 = vrot.slane %v171, 2
        %v946 = vsel %vm941, %v943, %v945
        %v947 = vrot.slane %v172, 2
        %v948 = vrot.slane %v173, 2
        %v949 = vsel %vm941, %v947, %v948
        %v950 = vrot.slane %v174, 2
        %v951 = vsel %vm941, %v948, %v950
        %v952 = vrot.slane %v175, 2
        %v953 = vrot.slane %v176, 2
        %v954 = vsel %vm941, %v952, %v953
        %v955 = vrot.slane %v177, 2
        %v956 = vsel %vm941, %v953, %v955
        %v957 = vrot.slane %v178, 2
        %v958 = vrot.slane %v179, 2
        %v959 = vsel %vm941, %v957, %v958
        %v960 = vrot.slane %v180, 2
        %v961 = vsel %vm941, %v958, %v960
        %v962 = vrot.slane %v181, 2
        %v963 = vrot.slane %v182, 2
        %v964 = vsel %vm941, %v962, %v963
        %v965 = vrot.slane %v183, 2
        %v966 = vsel %vm941, %v963, %v965
        %v967 = vrot.slane %v184, 2
        %v968 = vrot.slane %v185, 2
        %v969 = vsel %vm941, %v967, %v968
        %v970 = vrot.slane %v186, 2
        %v971 = vsel %vm941, %v968, %v970
        %v972 = vrot.slane %v187, 2
        %v973 = vrot.slane %v188, 2
        %v974 = vsel %vm941, %v972, %v973
        %v975 = vrot.slane %v189, 2
        %v976 = vsel %vm941, %v973, %v975
        %v977 = vrot.slane %v190, 2
        %v978 = vrot.slane %v191, 2
        %v979 = vsel %vm941, %v977, %v978
        %v980 = vrot.slane %v192, 2
        %v981 = vsel %vm941, %v978, %v980
        %v982 = vrot.slane %v193, 2
        %v983 = vrot.slane %v194, 2
        %v984 = vsel %vm941, %v982, %v983
        %v985 = vrot.slane %v195, 2
        %v986 = vsel %vm941, %v983, %v985
        %v987 = vrot.slane %v196, 2
        %v988 = vrot.slane %v197, 2
        %v989 = vsel %vm941, %v987, %v988
        %v990 = vrot.slane %v198, 2
        %v991 = vsel %vm941, %v988, %v990
        %v992 = vrot.slane %v199, 2
        %v993 = vrot.slane %v200, 2
        %v994 = vsel %vm941, %v992, %v993
        %v995 = vrot.slane %v201, 2
        %v996 = vsel %vm941, %v993, %v995
        %v997 = vrot.slane %v202, 2
        %v998 = vrot.slane %v203, 2
        %v999 = vsel %vm941, %v997, %v998
        %v1000 = vrot.slane %v204, 2
        %v1001 = vsel %vm941, %v998, %v1000
        %v1002 = vrot.slane %v205, 2
        %v1003 = vrot.slane %v206, 2
        %v1004 = vsel %vm941, %v1002, %v1003
        %v1005 = vrot.slane %v207, 2
        %v1006 = vsel %vm941, %v1003, %v1005
        %v1007 = vrot.slane %v208, 2
        %v1008 = vrot.slane %v209, 2
        %v1009 = vsel %vm941, %v1007, %v1008
        %v1010 = vrot.slane %v210, 2
        %v1011 = vsel %vm941, %v1008, %v1010
        %v1012 = vrot.slane %v211, 2
        %v1013 = vrot.slane %v212, 2
        %v1014 = vsel %vm941, %v1012, %v1013
        %v1015 = vrot.slane %v213, 2
        %v1016 = vsel %vm941, %v1013, %v1015
        %v1017 = vrot.slane %v214, 2
        %v1018 = vrot.slane %v215, 2
        %v1019 = vsel %vm941, %v1017, %v1018
        %v1020 = vrot.slane %v216, 2
        %v1021 = vsel %vm941, %v1018, %v1020
        %s1022 = scalar_lea.vmem %s1, 8
        %v1023 = vld [vmem:[%s1022] sm:$0xf]
        %v1024 = vsel %vm355, %v944, 0
        %v1026 = vsel %vm355, %v946, 0
        %v1028 = vsel %vm355, %v949, 0
        %v1030 = vsel %vm355, %v951, 0
        %v1032 = vsel %vm355, %v954, 0
        %v1034 = vsel %vm355, %v956, 0
        %v1036 = vsel %vm355, %v959, 0
        %v1038 = vsel %vm355, %v961, 0
        %v1040 = vsel %vm355, %v964, 0
        %v1042 = vsel %vm355, %v966, 0
        %v1044 = vsel %vm355, %v969, 0
        %v1046 = vsel %vm355, %v971, 0
        %v1048 = vsel %vm355, %v974, 0
        %v1050 = vsel %vm355, %v976, 0
        %v1052 = vsel %vm355, %v979, 0
        %v1054 = vsel %vm355, %v981, 0
        %v1056 = vsel %vm355, %v984, 0
        %v1058 = vsel %vm355, %v986, 0
        %v1060 = vsel %vm355, %v989, 0
        %v1062 = vsel %vm355, %v991, 0
        %v1064 = vsel %vm355, %v994, 0
        %v1066 = vsel %vm355, %v996, 0
        %v1068 = vsel %vm355, %v999, 0
        %v1070 = vsel %vm355, %v1001, 0
        %v1072 = vsel %vm355, %v1004, 0
        %v1074 = vsel %vm355, %v1006, 0
        %v1076 = vsel %vm355, %v1009, 0
        %v1078 = vsel %vm355, %v1011, 0
        %v1080 = vsel %vm355, %v1014, 0
        %v1082 = vsel %vm355, %v1016, 0
        %v1084 = vsel %vm355, %v1019, 0
        %v1086 = vsel %vm355, %v1021, 0
        %v1089 = vsel %vm420, %v1023, 0
        %1091 = vmatprep.subr.mxu0 0.0
        %1092 = vmatpush1.msra.mxu0 0.0
        %1093 = vmatprep.subr.mxu0 0.0
        %1094 = vmatpush1.msra.mxu0 0.0
        %1095 = vmatprep.subr.mxu0 0.0
        %1096 = vmatpush1.msra.mxu0 0.0
        %1097 = vmatprep.subr.mxu0 0.0
        %1098 = vmatpush1.msra.mxu0 0.0
        %1099 = vmatprep.subr.mxu0 0.0
        %1100 = vmatpush1.msra.mxu0 0.0
        %1101 = vmatprep.subr.mxu0 0.0
        %1102 = vmatpush1.msra.mxu0 0.0
        %1103 = vmatprep.subr.mxu0 0.0
        %1104 = vmatpush1.msra.mxu0 0.0
        %1105 = vmatprep.subr.mxu0 0.0
        %1106 = vmatpush1.msra.mxu0 0.0
        %1107 = vmatprep.subr.mxu0 0.0
        %1108 = vmatpush1.msra.mxu0 0.0
        %1109 = vmatprep.subr.mxu0 0.0
        %1110 = vmatpush1.msra.mxu0 0.0
        %1111 = vmatprep.subr.mxu0 0.0
        %1112 = vmatpush1.msra.mxu0 0.0
        %1113 = vmatprep.subr.mxu0 0.0
        %1114 = vmatpush1.msra.mxu0 0.0
        %1115 = vmatprep.subr.mxu0 0.0
        %1116 = vmatpush1.msra.mxu0 0.0
        %1117 = vmatprep.subr.mxu0 0.0
        %1118 = vmatpush1.msra.mxu0 0.0
        %1119 = vmatprep.subr.mxu0 0.0
        %1120 = vmatpush1.msra.mxu0 0.0
        %1121 = vmatprep.subr.mxu0 0.0
        %1122 = vmatpush1.msra.mxu0 %v1089
        %1123 = vmatprep.subr.mxu0 0.0
        %1124 = vmatpush2.msra.mxu0 0.0
        %1125 = vmatprep.subr.mxu0 0.0
        %1126 = vmatpush2.msra.mxu0 0.0
        %1127 = vmatprep.subr.mxu0 0.0
        %1128 = vmatpush2.msra.mxu0 0.0
        %1129 = vmatprep.subr.mxu0 0.0
        %1130 = vmatpush2.msra.mxu0 0.0
        %1131 = vmatprep.subr.mxu0 0.0
        %1132 = vmatpush2.msra.mxu0 0.0
        %1133 = vmatprep.subr.mxu0 0.0
        %1134 = vmatpush2.msra.mxu0 0.0
        %1135 = vmatprep.subr.mxu0 0.0
        %1136 = vmatpush2.msra.mxu0 0.0
        %1137 = vmatprep.subr.mxu0 0.0
        %1138 = vmatpush2.msra.mxu0 0.0
        %1139 = vmatprep.subr.mxu0 0.0
        %1140 = vmatpush2.msra.mxu0 0.0
        %1141 = vmatprep.subr.mxu0 0.0
        %1142 = vmatpush2.msra.mxu0 0.0
        %1143 = vmatprep.subr.mxu0 0.0
        %1144 = vmatpush2.msra.mxu0 0.0
        %1145 = vmatprep.subr.mxu0 0.0
        %1146 = vmatpush2.msra.mxu0 0.0
        %1147 = vmatprep.subr.mxu0 0.0
        %1148 = vmatpush2.msra.mxu0 0.0
        %1149 = vmatprep.subr.mxu0 0.0
        %1150 = vmatpush2.msra.mxu0 0.0
        %1151 = vmatprep.subr.mxu0 0.0
        %1152 = vmatpush2.msra.mxu0 0.0
        %1153 = vmatprep.subr.mxu0 0.0
        %1154 = vmatpush2.msra.mxu0 0.0
        %1155 = vmatprep.mubr.f32.mxu0 0.0
        %1156 = vmatmul.mubr.f32.gmra.mxu0 %v1024
        %v1157 = vpop.f32.mrf.mxu0
        %v1158 = vadd.f32 0.0, %v1157
        %v1159 = vpop.f32.mrf.mxu0
        %1160 = vmatprep.mubr.f32.mxu0 0.0
        %1161 = vmatmul.mubr.f32.gmra.mxu0 %v1026
        %v1162 = vpop.f32.mrf.mxu0
        %v1163 = vadd.f32 0.0, %v1162
        %v1164 = vpop.f32.mrf.mxu0
        %1165 = vmatprep.mubr.f32.mxu0 0.0
        %1166 = vmatmul.mubr.f32.gmra.mxu0 %v1028
        %v1167 = vpop.f32.mrf.mxu0
        %v1168 = vadd.f32 0.0, %v1167
        %v1169 = vpop.f32.mrf.mxu0
        %1170 = vmatprep.mubr.f32.mxu0 0.0
        %1171 = vmatmul.mubr.f32.gmra.mxu0 %v1030
        %v1172 = vpop.f32.mrf.mxu0
        %v1173 = vadd.f32 0.0, %v1172
        %v1174 = vpop.f32.mrf.mxu0
        %1175 = vmatprep.mubr.f32.mxu0 0.0
        %1176 = vmatmul.mubr.f32.gmra.mxu0 %v1032
        %v1177 = vpop.f32.mrf.mxu0
        %v1178 = vadd.f32 0.0, %v1177
        %v1179 = vpop.f32.mrf.mxu0
        %1180 = vmatprep.mubr.f32.mxu0 0.0
        %1181 = vmatmul.mubr.f32.gmra.mxu0 %v1034
        %v1182 = vpop.f32.mrf.mxu0
        %v1183 = vadd.f32 0.0, %v1182
        %v1184 = vpop.f32.mrf.mxu0
        %1185 = vmatprep.mubr.f32.mxu0 0.0
        %1186 = vmatmul.mubr.f32.gmra.mxu0 %v1036
        %v1187 = vpop.f32.mrf.mxu0
        %v1188 = vadd.f32 0.0, %v1187
        %v1189 = vpop.f32.mrf.mxu0
        %1190 = vmatprep.mubr.f32.mxu0 0.0
        %1191 = vmatmul.mubr.f32.gmra.mxu0 %v1038
        %v1192 = vpop.f32.mrf.mxu0
        %v1193 = vadd.f32 0.0, %v1192
        %v1194 = vpop.f32.mrf.mxu0
        %1195 = vmatprep.mubr.f32.mxu0 0.0
        %1196 = vmatmul.mubr.f32.gmra.mxu0 %v1040
        %v1197 = vpop.f32.mrf.mxu0
        %v1198 = vadd.f32 0.0, %v1197
        %v1199 = vpop.f32.mrf.mxu0
        %1200 = vmatprep.mubr.f32.mxu0 0.0
        %1201 = vmatmul.mubr.f32.gmra.mxu0 %v1042
        %v1202 = vpop.f32.mrf.mxu0
        %v1203 = vadd.f32 0.0, %v1202
        %v1204 = vpop.f32.mrf.mxu0
        %1205 = vmatprep.mubr.f32.mxu0 0.0
        %1206 = vmatmul.mubr.f32.gmra.mxu0 %v1044
        %v1207 = vpop.f32.mrf.mxu0
        %v1208 = vadd.f32 0.0, %v1207
        %v1209 = vpop.f32.mrf.mxu0
        %1210 = vmatprep.mubr.f32.mxu0 0.0
        %1211 = vmatmul.mubr.f32.gmra.mxu0 %v1046
        %v1212 = vpop.f32.mrf.mxu0
        %v1213 = vadd.f32 0.0, %v1212
        %v1214 = vpop.f32.mrf.mxu0
        %1215 = vmatprep.mubr.f32.mxu0 0.0
        %1216 = vmatmul.mubr.f32.gmra.mxu0 %v1048
        %v1217 = vpop.f32.mrf.mxu0
        %v1218 = vadd.f32 0.0, %v1217
        %v1219 = vpop.f32.mrf.mxu0
        %1220 = vmatprep.mubr.f32.mxu0 0.0
        %1221 = vmatmul.mubr.f32.gmra.mxu0 %v1050
        %v1222 = vpop.f32.mrf.mxu0
        %v1223 = vadd.f32 0.0, %v1222
        %v1224 = vpop.f32.mrf.mxu0
        %1225 = vmatprep.mubr.f32.mxu0 0.0
        %1226 = vmatmul.mubr.f32.gmra.mxu0 %v1052
        %v1227 = vpop.f32.mrf.mxu0
        %v1228 = vadd.f32 0.0, %v1227
        %v1229 = vpop.f32.mrf.mxu0
        %1230 = vmatprep.mubr.f32.mxu0 0.0
        %1231 = vmatmul.mubr.f32.gmra.mxu0 %v1054
        %v1232 = vpop.f32.mrf.mxu0
        %v1233 = vadd.f32 0.0, %v1232
        %v1234 = vpop.f32.mrf.mxu0
        %1235 = vmatprep.mubr.f32.mxu0 0.0
        %1236 = vmatmul.mubr.f32.gmra.mxu0 %v1056
        %v1237 = vpop.f32.mrf.mxu0
        %v1238 = vadd.f32 0.0, %v1237
        %v1239 = vpop.f32.mrf.mxu0
        %1240 = vmatprep.mubr.f32.mxu0 0.0
        %1241 = vmatmul.mubr.f32.gmra.mxu0 %v1058
        %v1242 = vpop.f32.mrf.mxu0
        %v1243 = vadd.f32 0.0, %v1242
        %v1244 = vpop.f32.mrf.mxu0
        %1245 = vmatprep.mubr.f32.mxu0 0.0
        %1246 = vmatmul.mubr.f32.gmra.mxu0 %v1060
        %v1247 = vpop.f32.mrf.mxu0
        %v1248 = vadd.f32 0.0, %v1247
        %v1249 = vpop.f32.mrf.mxu0
        %1250 = vmatprep.mubr.f32.mxu0 0.0
        %1251 = vmatmul.mubr.f32.gmra.mxu0 %v1062
        %v1252 = vpop.f32.mrf.mxu0
        %v1253 = vadd.f32 0.0, %v1252
        %v1254 = vpop.f32.mrf.mxu0
        %1255 = vmatprep.mubr.f32.mxu0 0.0
        %1256 = vmatmul.mubr.f32.gmra.mxu0 %v1064
        %v1257 = vpop.f32.mrf.mxu0
        %v1258 = vadd.f32 0.0, %v1257
        %v1259 = vpop.f32.mrf.mxu0
        %1260 = vmatprep.mubr.f32.mxu0 0.0
        %1261 = vmatmul.mubr.f32.gmra.mxu0 %v1066
        %v1262 = vpop.f32.mrf.mxu0
        %v1263 = vadd.f32 0.0, %v1262
        %v1264 = vpop.f32.mrf.mxu0
        %1265 = vmatprep.mubr.f32.mxu0 0.0
        %1266 = vmatmul.mubr.f32.gmra.mxu0 %v1068
        %v1267 = vpop.f32.mrf.mxu0
        %v1268 = vadd.f32 0.0, %v1267
        %v1269 = vpop.f32.mrf.mxu0
        %1270 = vmatprep.mubr.f32.mxu0 0.0
        %1271 = vmatmul.mubr.f32.gmra.mxu0 %v1070
        %v1272 = vpop.f32.mrf.mxu0
        %v1273 = vadd.f32 0.0, %v1272
        %v1274 = vpop.f32.mrf.mxu0
        %1275 = vmatprep.mubr.f32.mxu0 0.0
        %1276 = vmatmul.mubr.f32.gmra.mxu0 %v1072
        %v1277 = vpop.f32.mrf.mxu0
        %v1278 = vadd.f32 0.0, %v1277
        %v1279 = vpop.f32.mrf.mxu0
        %1280 = vmatprep.mubr.f32.mxu0 0.0
        %1281 = vmatmul.mubr.f32.gmra.mxu0 %v1074
        %v1282 = vpop.f32.mrf.mxu0
        %v1283 = vadd.f32 0.0, %v1282
        %v1284 = vpop.f32.mrf.mxu0
        %1285 = vmatprep.mubr.f32.mxu0 0.0
        %1286 = vmatmul.mubr.f32.gmra.mxu0 %v1076
        %v1287 = vpop.f32.mrf.mxu0
        %v1288 = vadd.f32 0.0, %v1287
        %v1289 = vpop.f32.mrf.mxu0
        %1290 = vmatprep.mubr.f32.mxu0 0.0
        %1291 = vmatmul.mubr.f32.gmra.mxu0 %v1078
        %v1292 = vpop.f32.mrf.mxu0
        %v1293 = vadd.f32 0.0, %v1292
        %v1294 = vpop.f32.mrf.mxu0
        %1295 = vmatprep.mubr.f32.mxu0 0.0
        %1296 = vmatmul.mubr.f32.gmra.mxu0 %v1080
        %v1297 = vpop.f32.mrf.mxu0
        %v1298 = vadd.f32 0.0, %v1297
        %v1299 = vpop.f32.mrf.mxu0
        %1300 = vmatprep.mubr.f32.mxu0 0.0
        %1301 = vmatmul.mubr.f32.gmra.mxu0 %v1082
        %v1302 = vpop.f32.mrf.mxu0
        %v1303 = vadd.f32 0.0, %v1302
        %v1304 = vpop.f32.mrf.mxu0
        %1305 = vmatprep.mubr.f32.mxu0 0.0
        %1306 = vmatmul.mubr.f32.gmra.mxu0 %v1084
        %v1307 = vpop.f32.mrf.mxu0
        %v1308 = vadd.f32 0.0, %v1307
        %v1309 = vpop.f32.mrf.mxu0
        %1310 = vmatprep.mubr.f32.mxu0 0.0
        %1311 = vmatmul.mubr.f32.gmra.mxu0 %v1086
        %v1312 = vpop.f32.mrf.mxu0
        %v1313 = vadd.f32 0.0, %v1312
        %v1314 = vpop.f32.mrf.mxu0
        %1315 = vdwg.mxu0
        %v1316 = vadd.f32 %v783, %v1158
        %v1317 = vadd.f32 %v788, %v1163
        %v1318 = vadd.f32 %v793, %v1168
        %v1319 = vadd.f32 %v798, %v1173
        %v1320 = vadd.f32 %v803, %v1178
        %v1321 = vadd.f32 %v808, %v1183
        %v1322 = vadd.f32 %v813, %v1188
        %v1323 = vadd.f32 %v818, %v1193
        %v1324 = vadd.f32 %v823, %v1198
        %v1325 = vadd.f32 %v828, %v1203
        %v1326 = vadd.f32 %v833, %v1208
        %v1327 = vadd.f32 %v838, %v1213
        %v1328 = vadd.f32 %v843, %v1218
        %v1329 = vadd.f32 %v848, %v1223
        %v1330 = vadd.f32 %v853, %v1228
        %v1331 = vadd.f32 %v858, %v1233
        %v1332 = vadd.f32 %v863, %v1238
        %v1333 = vadd.f32 %v868, %v1243
        %v1334 = vadd.f32 %v873, %v1248
        %v1335 = vadd.f32 %v878, %v1253
        %v1336 = vadd.f32 %v883, %v1258
        %v1337 = vadd.f32 %v888, %v1263
        %v1338 = vadd.f32 %v893, %v1268
        %v1339 = vadd.f32 %v898, %v1273
        %v1340 = vadd.f32 %v903, %v1278
        %v1341 = vadd.f32 %v908, %v1283
        %v1342 = vadd.f32 %v913, %v1288
        %v1343 = vadd.f32 %v918, %v1293
        %v1344 = vadd.f32 %v923, %v1298
        %v1345 = vadd.f32 %v928, %v1303
        %v1346 = vadd.f32 %v933, %v1308
        %v1347 = vadd.f32 %v938, %v1313
        %s1348 = scalar_lea.vmem %s1, 12
        %v1349 = vld [vmem:[%s1348] sm:$0xf]
        %v1351 = vsel %vm355, %v217, 0
        %v1354 = vsel %vm355, %v218, 0
        %v1357 = vsel %vm420, %v1349, 0
        %1359 = vmatprep.subr.mxu0 0.0
        %1360 = vmatpush1.msra.mxu0 0.0
        %1361 = vmatprep.subr.mxu0 0.0
        %1362 = vmatpush1.msra.mxu0 0.0
        %1363 = vmatprep.subr.mxu0 0.0
        %1364 = vmatpush1.msra.mxu0 0.0
        %1365 = vmatprep.subr.mxu0 0.0
        %1366 = vmatpush1.msra.mxu0 0.0
        %1367 = vmatprep.subr.mxu0 0.0
        %1368 = vmatpush1.msra.mxu0 0.0
        %1369 = vmatprep.subr.mxu0 0.0
        %1370 = vmatpush1.msra.mxu0 0.0
        %1371 = vmatprep.subr.mxu0 0.0
        %1372 = vmatpush1.msra.mxu0 0.0
        %1373 = vmatprep.subr.mxu0 0.0
        %1374 = vmatpush1.msra.mxu0 0.0
        %1375 = vmatprep.subr.mxu0 0.0
        %1376 = vmatpush1.msra.mxu0 0.0
        %1377 = vmatprep.subr.mxu0 0.0
        %1378 = vmatpush1.msra.mxu0 0.0
        %1379 = vmatprep.subr.mxu0 0.0
        %1380 = vmatpush1.msra.mxu0 0.0
        %1381 = vmatprep.subr.mxu0 0.0
        %1382 = vmatpush1.msra.mxu0 0.0
        %1383 = vmatprep.subr.mxu0 0.0
        %1384 = vmatpush1.msra.mxu0 0.0
        %1385 = vmatprep.subr.mxu0 0.0
        %1386 = vmatpush1.msra.mxu0 0.0
        %1387 = vmatprep.subr.mxu0 0.0
        %1388 = vmatpush1.msra.mxu0 0.0
        %1389 = vmatprep.subr.mxu0 0.0
        %1390 = vmatpush1.msra.mxu0 %v1357
        %1391 = vmatprep.subr.mxu0 0.0
        %1392 = vmatpush2.msra.mxu0 0.0
        %1393 = vmatprep.subr.mxu0 0.0
        %1394 = vmatpush2.msra.mxu0 0.0
        %1395 = vmatprep.subr.mxu0 0.0
        %1396 = vmatpush2.msra.mxu0 0.0
        %1397 = vmatprep.subr.mxu0 0.0
        %1398 = vmatpush2.msra.mxu0 0.0
        %1399 = vmatprep.subr.mxu0 0.0
        %1400 = vmatpush2.msra.mxu0 0.0
        %1401 = vmatprep.subr.mxu0 0.0
        %1402 = vmatpush2.msra.mxu0 0.0
        %1403 = vmatprep.subr.mxu0 0.0
        %1404 = vmatpush2.msra.mxu0 0.0
        %1405 = vmatprep.subr.mxu0 0.0
        %1406 = vmatpush2.msra.mxu0 0.0
        %1407 = vmatprep.subr.mxu0 0.0
        %1408 = vmatpush2.msra.mxu0 0.0
        %1409 = vmatprep.subr.mxu0 0.0
        %1410 = vmatpush2.msra.mxu0 0.0
        %1411 = vmatprep.subr.mxu0 0.0
        %1412 = vmatpush2.msra.mxu0 0.0
        %1413 = vmatprep.subr.mxu0 0.0
        %1414 = vmatpush2.msra.mxu0 0.0
        %1415 = vmatprep.subr.mxu0 0.0
        %1416 = vmatpush2.msra.mxu0 0.0
        %1417 = vmatprep.subr.mxu0 0.0
        %1418 = vmatpush2.msra.mxu0 0.0
        %1419 = vmatprep.subr.mxu0 0.0
        %1420 = vmatpush2.msra.mxu0 0.0
        %1421 = vmatprep.subr.mxu0 0.0
        %1422 = vmatpush2.msra.mxu0 0.0
        %1423 = vmatprep.mubr.f32.mxu0 0.0
        %1424 = vmatmul.mubr.f32.gmra.mxu0 %v653
        %v1425 = vpop.f32.mrf.mxu0
        %v1426 = vadd.f32 0.0, %v1425
        %v1427 = vpop.f32.mrf.mxu0
        %1428 = vmatprep.mubr.f32.mxu0 0.0
        %1429 = vmatmul.mubr.f32.gmra.mxu0 %v655
        %v1430 = vpop.f32.mrf.mxu0
        %v1431 = vadd.f32 0.0, %v1430
        %v1432 = vpop.f32.mrf.mxu0
        %1433 = vmatprep.mubr.f32.mxu0 0.0
        %1434 = vmatmul.mubr.f32.gmra.mxu0 %v657
        %v1435 = vpop.f32.mrf.mxu0
        %v1436 = vadd.f32 0.0, %v1435
        %v1437 = vpop.f32.mrf.mxu0
        %1438 = vmatprep.mubr.f32.mxu0 0.0
        %1439 = vmatmul.mubr.f32.gmra.mxu0 %v659
        %v1440 = vpop.f32.mrf.mxu0
        %v1441 = vadd.f32 0.0, %v1440
        %v1442 = vpop.f32.mrf.mxu0
        %1443 = vmatprep.mubr.f32.mxu0 0.0
        %1444 = vmatmul.mubr.f32.gmra.mxu0 %v661
        %v1445 = vpop.f32.mrf.mxu0
        %v1446 = vadd.f32 0.0, %v1445
        %v1447 = vpop.f32.mrf.mxu0
        %1448 = vmatprep.mubr.f32.mxu0 0.0
        %1449 = vmatmul.mubr.f32.gmra.mxu0 %v663
        %v1450 = vpop.f32.mrf.mxu0
        %v1451 = vadd.f32 0.0, %v1450
        %v1452 = vpop.f32.mrf.mxu0
        %1453 = vmatprep.mubr.f32.mxu0 0.0
        %1454 = vmatmul.mubr.f32.gmra.mxu0 %v665
        %v1455 = vpop.f32.mrf.mxu0
        %v1456 = vadd.f32 0.0, %v1455
        %v1457 = vpop.f32.mrf.mxu0
        %1458 = vmatprep.mubr.f32.mxu0 0.0
        %1459 = vmatmul.mubr.f32.gmra.mxu0 %v667
        %v1460 = vpop.f32.mrf.mxu0
        %v1461 = vadd.f32 0.0, %v1460
        %v1462 = vpop.f32.mrf.mxu0
        %1463 = vmatprep.mubr.f32.mxu0 0.0
        %1464 = vmatmul.mubr.f32.gmra.mxu0 %v669
        %v1465 = vpop.f32.mrf.mxu0
        %v1466 = vadd.f32 0.0, %v1465
        %v1467 = vpop.f32.mrf.mxu0
        %1468 = vmatprep.mubr.f32.mxu0 0.0
        %1469 = vmatmul.mubr.f32.gmra.mxu0 %v671
        %v1470 = vpop.f32.mrf.mxu0
        %v1471 = vadd.f32 0.0, %v1470
        %v1472 = vpop.f32.mrf.mxu0
        %1473 = vmatprep.mubr.f32.mxu0 0.0
        %1474 = vmatmul.mubr.f32.gmra.mxu0 %v673
        %v1475 = vpop.f32.mrf.mxu0
        %v1476 = vadd.f32 0.0, %v1475
        %v1477 = vpop.f32.mrf.mxu0
        %1478 = vmatprep.mubr.f32.mxu0 0.0
        %1479 = vmatmul.mubr.f32.gmra.mxu0 %v675
        %v1480 = vpop.f32.mrf.mxu0
        %v1481 = vadd.f32 0.0, %v1480
        %v1482 = vpop.f32.mrf.mxu0
        %1483 = vmatprep.mubr.f32.mxu0 0.0
        %1484 = vmatmul.mubr.f32.gmra.mxu0 %v677
        %v1485 = vpop.f32.mrf.mxu0
        %v1486 = vadd.f32 0.0, %v1485
        %v1487 = vpop.f32.mrf.mxu0
        %1488 = vmatprep.mubr.f32.mxu0 0.0
        %1489 = vmatmul.mubr.f32.gmra.mxu0 %v679
        %v1490 = vpop.f32.mrf.mxu0
        %v1491 = vadd.f32 0.0, %v1490
        %v1492 = vpop.f32.mrf.mxu0
        %1493 = vmatprep.mubr.f32.mxu0 0.0
        %1494 = vmatmul.mubr.f32.gmra.mxu0 %v681
        %v1495 = vpop.f32.mrf.mxu0
        %v1496 = vadd.f32 0.0, %v1495
        %v1497 = vpop.f32.mrf.mxu0
        %1498 = vmatprep.mubr.f32.mxu0 0.0
        %1499 = vmatmul.mubr.f32.gmra.mxu0 %v683
        %v1500 = vpop.f32.mrf.mxu0
        %v1501 = vadd.f32 0.0, %v1500
        %v1502 = vpop.f32.mrf.mxu0
        %1503 = vmatprep.mubr.f32.mxu0 0.0
        %1504 = vmatmul.mubr.f32.gmra.mxu0 %v685
        %v1505 = vpop.f32.mrf.mxu0
        %v1506 = vadd.f32 0.0, %v1505
        %v1507 = vpop.f32.mrf.mxu0
        %1508 = vmatprep.mubr.f32.mxu0 0.0
        %1509 = vmatmul.mubr.f32.gmra.mxu0 %v687
        %v1510 = vpop.f32.mrf.mxu0
        %v1511 = vadd.f32 0.0, %v1510
        %v1512 = vpop.f32.mrf.mxu0
        %1513 = vmatprep.mubr.f32.mxu0 0.0
        %1514 = vmatmul.mubr.f32.gmra.mxu0 %v689
        %v1515 = vpop.f32.mrf.mxu0
        %v1516 = vadd.f32 0.0, %v1515
        %v1517 = vpop.f32.mrf.mxu0
        %1518 = vmatprep.mubr.f32.mxu0 0.0
        %1519 = vmatmul.mubr.f32.gmra.mxu0 %v691
        %v1520 = vpop.f32.mrf.mxu0
        %v1521 = vadd.f32 0.0, %v1520
        %v1522 = vpop.f32.mrf.mxu0
        %1523 = vmatprep.mubr.f32.mxu0 0.0
        %1524 = vmatmul.mubr.f32.gmra.mxu0 %v693
        %v1525 = vpop.f32.mrf.mxu0
        %v1526 = vadd.f32 0.0, %v1525
        %v1527 = vpop.f32.mrf.mxu0
        %1528 = vmatprep.mubr.f32.mxu0 0.0
        %1529 = vmatmul.mubr.f32.gmra.mxu0 %v695
        %v1530 = vpop.f32.mrf.mxu0
        %v1531 = vadd.f32 0.0, %v1530
        %v1532 = vpop.f32.mrf.mxu0
        %1533 = vmatprep.mubr.f32.mxu0 0.0
        %1534 = vmatmul.mubr.f32.gmra.mxu0 %v697
        %v1535 = vpop.f32.mrf.mxu0
        %v1536 = vadd.f32 0.0, %v1535
        %v1537 = vpop.f32.mrf.mxu0
        %1538 = vmatprep.mubr.f32.mxu0 0.0
        %1539 = vmatmul.mubr.f32.gmra.mxu0 %v699
        %v1540 = vpop.f32.mrf.mxu0
        %v1541 = vadd.f32 0.0, %v1540
        %v1542 = vpop.f32.mrf.mxu0
        %1543 = vmatprep.mubr.f32.mxu0 0.0
        %1544 = vmatmul.mubr.f32.gmra.mxu0 %v701
        %v1545 = vpop.f32.mrf.mxu0
        %v1546 = vadd.f32 0.0, %v1545
        %v1547 = vpop.f32.mrf.mxu0
        %1548 = vmatprep.mubr.f32.mxu0 0.0
        %1549 = vmatmul.mubr.f32.gmra.mxu0 %v703
        %v1550 = vpop.f32.mrf.mxu0
        %v1551 = vadd.f32 0.0, %v1550
        %v1552 = vpop.f32.mrf.mxu0
        %1553 = vmatprep.mubr.f32.mxu0 0.0
        %1554 = vmatmul.mubr.f32.gmra.mxu0 %v705
        %v1555 = vpop.f32.mrf.mxu0
        %v1556 = vadd.f32 0.0, %v1555
        %v1557 = vpop.f32.mrf.mxu0
        %1558 = vmatprep.mubr.f32.mxu0 0.0
        %1559 = vmatmul.mubr.f32.gmra.mxu0 %v707
        %v1560 = vpop.f32.mrf.mxu0
        %v1561 = vadd.f32 0.0, %v1560
        %v1562 = vpop.f32.mrf.mxu0
        %1563 = vmatprep.mubr.f32.mxu0 0.0
        %1564 = vmatmul.mubr.f32.gmra.mxu0 %v709
        %v1565 = vpop.f32.mrf.mxu0
        %v1566 = vadd.f32 0.0, %v1565
        %v1567 = vpop.f32.mrf.mxu0
        %1568 = vmatprep.mubr.f32.mxu0 0.0
        %1569 = vmatmul.mubr.f32.gmra.mxu0 %v711
        %v1570 = vpop.f32.mrf.mxu0
        %v1571 = vadd.f32 0.0, %v1570
        %v1572 = vpop.f32.mrf.mxu0
        %1573 = vmatprep.mubr.f32.mxu0 0.0
        %1574 = vmatmul.mubr.f32.gmra.mxu0 %v1351
        %v1575 = vpop.f32.mrf.mxu0
        %v1576 = vadd.f32 0.0, %v1575
        %v1577 = vpop.f32.mrf.mxu0
        %1578 = vmatprep.mubr.f32.mxu0 0.0
        %1579 = vmatmul.mubr.f32.gmra.mxu0 %v1354
        %v1580 = vpop.f32.mrf.mxu0
        %v1581 = vadd.f32 0.0, %v1580
        %v1582 = vpop.f32.mrf.mxu0
        %1583 = vdwg.mxu0
        %v1584 = vadd.f32 %v1316, %v1426
        %v1585 = vadd.f32 %v1317, %v1431
        %v1586 = vadd.f32 %v1318, %v1436
        %v1587 = vadd.f32 %v1319, %v1441
        %v1588 = vadd.f32 %v1320, %v1446
        %v1589 = vadd.f32 %v1321, %v1451
        %v1590 = vadd.f32 %v1322, %v1456
        %v1591 = vadd.f32 %v1323, %v1461
        %v1592 = vadd.f32 %v1324, %v1466
        %v1593 = vadd.f32 %v1325, %v1471
        %v1594 = vadd.f32 %v1326, %v1476
        %v1595 = vadd.f32 %v1327, %v1481
        %v1596 = vadd.f32 %v1328, %v1486
        %v1597 = vadd.f32 %v1329, %v1491
        %v1598 = vadd.f32 %v1330, %v1496
        %v1599 = vadd.f32 %v1331, %v1501
        %v1600 = vadd.f32 %v1332, %v1506
        %v1601 = vadd.f32 %v1333, %v1511
        %v1602 = vadd.f32 %v1334, %v1516
        %v1603 = vadd.f32 %v1335, %v1521
        %v1604 = vadd.f32 %v1336, %v1526
        %v1605 = vadd.f32 %v1337, %v1531
        %v1606 = vadd.f32 %v1338, %v1536
        %v1607 = vadd.f32 %v1339, %v1541
        %v1608 = vadd.f32 %v1340, %v1546
        %v1609 = vadd.f32 %v1341, %v1551
        %v1610 = vadd.f32 %v1342, %v1556
        %v1611 = vadd.f32 %v1343, %v1561
        %v1612 = vadd.f32 %v1344, %v1566
        %v1613 = vadd.f32 %v1345, %v1571
        %v1614 = vadd.f32 %v1346, %v1576
        %v1615 = vadd.f32 %v1347, %v1581
        %v1617 = vrot.slane %v217, 1
        %v1618 = vrot.slane %v218, 1
        %v1619 = vsel %vm272, %v1617, %v1618
        %v1620 = vrot.slane %v219, 1
        %v1621 = vsel %vm272, %v1618, %v1620
        %s1622 = scalar_lea.vmem %s1, 16
        %v1623 = vld [vmem:[%s1622] sm:$0xf]
        %v1624 = vsel %vm355, %v1619, 0
        %v1626 = vsel %vm355, %v1621, 0
        %v1629 = vsel %vm420, %v1623, 0
        %1631 = vmatprep.subr.mxu0 0.0
        %1632 = vmatpush1.msra.mxu0 0.0
        %1633 = vmatprep.subr.mxu0 0.0
        %1634 = vmatpush1.msra.mxu0 0.0
        %1635 = vmatprep.subr.mxu0 0.0
        %1636 = vmatpush1.msra.mxu0 0.0
        %1637 = vmatprep.subr.mxu0 0.0
        %1638 = vmatpush1.msra.mxu0 0.0
        %1639 = vmatprep.subr.mxu0 0.0
        %1640 = vmatpush1.msra.mxu0 0.0
        %1641 = vmatprep.subr.mxu0 0.0
        %1642 = vmatpush1.msra.mxu0 0.0
        %1643 = vmatprep.subr.mxu0 0.0
        %1644 = vmatpush1.msra.mxu0 0.0
        %1645 = vmatprep.subr.mxu0 0.0
        %1646 = vmatpush1.msra.mxu0 0.0
        %1647 = vmatprep.subr.mxu0 0.0
        %1648 = vmatpush1.msra.mxu0 0.0
        %1649 = vmatprep.subr.mxu0 0.0
        %1650 = vmatpush1.msra.mxu0 0.0
        %1651 = vmatprep.subr.mxu0 0.0
        %1652 = vmatpush1.msra.mxu0 0.0
        %1653 = vmatprep.subr.mxu0 0.0
        %1654 = vmatpush1.msra.mxu0 0.0
        %1655 = vmatprep.subr.mxu0 0.0
        %1656 = vmatpush1.msra.mxu0 0.0
        %1657 = vmatprep.subr.mxu0 0.0
        %1658 = vmatpush1.msra.mxu0 0.0
        %1659 = vmatprep.subr.mxu0 0.0
        %1660 = vmatpush1.msra.mxu0 0.0
        %1661 = vmatprep.subr.mxu0 0.0
        %1662 = vmatpush1.msra.mxu0 %v1629
        %1663 = vmatprep.subr.mxu0 0.0
        %1664 = vmatpush2.msra.mxu0 0.0
        %1665 = vmatprep.subr.mxu0 0.0
        %1666 = vmatpush2.msra.mxu0 0.0
        %1667 = vmatprep.subr.mxu0 0.0
        %1668 = vmatpush2.msra.mxu0 0.0
        %1669 = vmatprep.subr.mxu0 0.0
        %1670 = vmatpush2.msra.mxu0 0.0
        %1671 = vmatprep.subr.mxu0 0.0
        %1672 = vmatpush2.msra.mxu0 0.0
        %1673 = vmatprep.subr.mxu0 0.0
        %1674 = vmatpush2.msra.mxu0 0.0
        %1675 = vmatprep.subr.mxu0 0.0
        %1676 = vmatpush2.msra.mxu0 0.0
        %1677 = vmatprep.subr.mxu0 0.0
        %1678 = vmatpush2.msra.mxu0 0.0
        %1679 = vmatprep.subr.mxu0 0.0
        %1680 = vmatpush2.msra.mxu0 0.0
        %1681 = vmatprep.subr.mxu0 0.0
        %1682 = vmatpush2.msra.mxu0 0.0
        %1683 = vmatprep.subr.mxu0 0.0
        %1684 = vmatpush2.msra.mxu0 0.0
        %1685 = vmatprep.subr.mxu0 0.0
        %1686 = vmatpush2.msra.mxu0 0.0
        %1687 = vmatprep.subr.mxu0 0.0
        %1688 = vmatpush2.msra.mxu0 0.0
        %1689 = vmatprep.subr.mxu0 0.0
        %1690 = vmatpush2.msra.mxu0 0.0
        %1691 = vmatprep.subr.mxu0 0.0
        %1692 = vmatpush2.msra.mxu0 0.0
        %1693 = vmatprep.subr.mxu0 0.0
        %1694 = vmatpush2.msra.mxu0 0.0
        %1695 = vmatprep.mubr.f32.mxu0 0.0
        %1696 = vmatmul.mubr.f32.gmra.mxu0 %v360
        %v1697 = vpop.f32.mrf.mxu0
        %v1698 = vadd.f32 0.0, %v1697
        %v1699 = vpop.f32.mrf.mxu0
        %1700 = vmatprep.mubr.f32.mxu0 0.0
        %1701 = vmatmul.mubr.f32.gmra.mxu0 %v362
        %v1702 = vpop.f32.mrf.mxu0
        %v1703 = vadd.f32 0.0, %v1702
        %v1704 = vpop.f32.mrf.mxu0
        %1705 = vmatprep.mubr.f32.mxu0 0.0
        %1706 = vmatmul.mubr.f32.gmra.mxu0 %v364
        %v1707 = vpop.f32.mrf.mxu0
        %v1708 = vadd.f32 0.0, %v1707
        %v1709 = vpop.f32.mrf.mxu0
        %1710 = vmatprep.mubr.f32.mxu0 0.0
        %1711 = vmatmul.mubr.f32.gmra.mxu0 %v366
        %v1712 = vpop.f32.mrf.mxu0
        %v1713 = vadd.f32 0.0, %v1712
        %v1714 = vpop.f32.mrf.mxu0
        %1715 = vmatprep.mubr.f32.mxu0 0.0
        %1716 = vmatmul.mubr.f32.gmra.mxu0 %v368
        %v1717 = vpop.f32.mrf.mxu0
        %v1718 = vadd.f32 0.0, %v1717
        %v1719 = vpop.f32.mrf.mxu0
        %1720 = vmatprep.mubr.f32.mxu0 0.0
        %1721 = vmatmul.mubr.f32.gmra.mxu0 %v370
        %v1722 = vpop.f32.mrf.mxu0
        %v1723 = vadd.f32 0.0, %v1722
        %v1724 = vpop.f32.mrf.mxu0
        %1725 = vmatprep.mubr.f32.mxu0 0.0
        %1726 = vmatmul.mubr.f32.gmra.mxu0 %v372
        %v1727 = vpop.f32.mrf.mxu0
        %v1728 = vadd.f32 0.0, %v1727
        %v1729 = vpop.f32.mrf.mxu0
        %1730 = vmatprep.mubr.f32.mxu0 0.0
        %1731 = vmatmul.mubr.f32.gmra.mxu0 %v374
        %v1732 = vpop.f32.mrf.mxu0
        %v1733 = vadd.f32 0.0, %v1732
        %v1734 = vpop.f32.mrf.mxu0
        %1735 = vmatprep.mubr.f32.mxu0 0.0
        %1736 = vmatmul.mubr.f32.gmra.mxu0 %v376
        %v1737 = vpop.f32.mrf.mxu0
        %v1738 = vadd.f32 0.0, %v1737
        %v1739 = vpop.f32.mrf.mxu0
        %1740 = vmatprep.mubr.f32.mxu0 0.0
        %1741 = vmatmul.mubr.f32.gmra.mxu0 %v378
        %v1742 = vpop.f32.mrf.mxu0
        %v1743 = vadd.f32 0.0, %v1742
        %v1744 = vpop.f32.mrf.mxu0
        %1745 = vmatprep.mubr.f32.mxu0 0.0
        %1746 = vmatmul.mubr.f32.gmra.mxu0 %v380
        %v1747 = vpop.f32.mrf.mxu0
        %v1748 = vadd.f32 0.0, %v1747
        %v1749 = vpop.f32.mrf.mxu0
        %1750 = vmatprep.mubr.f32.mxu0 0.0
        %1751 = vmatmul.mubr.f32.gmra.mxu0 %v382
        %v1752 = vpop.f32.mrf.mxu0
        %v1753 = vadd.f32 0.0, %v1752
        %v1754 = vpop.f32.mrf.mxu0
        %1755 = vmatprep.mubr.f32.mxu0 0.0
        %1756 = vmatmul.mubr.f32.gmra.mxu0 %v384
        %v1757 = vpop.f32.mrf.mxu0
        %v1758 = vadd.f32 0.0, %v1757
        %v1759 = vpop.f32.mrf.mxu0
        %1760 = vmatprep.mubr.f32.mxu0 0.0
        %1761 = vmatmul.mubr.f32.gmra.mxu0 %v386
        %v1762 = vpop.f32.mrf.mxu0
        %v1763 = vadd.f32 0.0, %v1762
        %v1764 = vpop.f32.mrf.mxu0
        %1765 = vmatprep.mubr.f32.mxu0 0.0
        %1766 = vmatmul.mubr.f32.gmra.mxu0 %v388
        %v1767 = vpop.f32.mrf.mxu0
        %v1768 = vadd.f32 0.0, %v1767
        %v1769 = vpop.f32.mrf.mxu0
        %1770 = vmatprep.mubr.f32.mxu0 0.0
        %1771 = vmatmul.mubr.f32.gmra.mxu0 %v390
        %v1772 = vpop.f32.mrf.mxu0
        %v1773 = vadd.f32 0.0, %v1772
        %v1774 = vpop.f32.mrf.mxu0
        %1775 = vmatprep.mubr.f32.mxu0 0.0
        %1776 = vmatmul.mubr.f32.gmra.mxu0 %v392
        %v1777 = vpop.f32.mrf.mxu0
        %v1778 = vadd.f32 0.0, %v1777
        %v1779 = vpop.f32.mrf.mxu0
        %1780 = vmatprep.mubr.f32.mxu0 0.0
        %1781 = vmatmul.mubr.f32.gmra.mxu0 %v394
        %v1782 = vpop.f32.mrf.mxu0
        %v1783 = vadd.f32 0.0, %v1782
        %v1784 = vpop.f32.mrf.mxu0
        %1785 = vmatprep.mubr.f32.mxu0 0.0
        %1786 = vmatmul.mubr.f32.gmra.mxu0 %v396
        %v1787 = vpop.f32.mrf.mxu0
        %v1788 = vadd.f32 0.0, %v1787
        %v1789 = vpop.f32.mrf.mxu0
        %1790 = vmatprep.mubr.f32.mxu0 0.0
        %1791 = vmatmul.mubr.f32.gmra.mxu0 %v398
        %v1792 = vpop.f32.mrf.mxu0
        %v1793 = vadd.f32 0.0, %v1792
        %v1794 = vpop.f32.mrf.mxu0
        %1795 = vmatprep.mubr.f32.mxu0 0.0
        %1796 = vmatmul.mubr.f32.gmra.mxu0 %v400
        %v1797 = vpop.f32.mrf.mxu0
        %v1798 = vadd.f32 0.0, %v1797
        %v1799 = vpop.f32.mrf.mxu0
        %1800 = vmatprep.mubr.f32.mxu0 0.0
        %1801 = vmatmul.mubr.f32.gmra.mxu0 %v402
        %v1802 = vpop.f32.mrf.mxu0
        %v1803 = vadd.f32 0.0, %v1802
        %v1804 = vpop.f32.mrf.mxu0
        %1805 = vmatprep.mubr.f32.mxu0 0.0
        %1806 = vmatmul.mubr.f32.gmra.mxu0 %v404
        %v1807 = vpop.f32.mrf.mxu0
        %v1808 = vadd.f32 0.0, %v1807
        %v1809 = vpop.f32.mrf.mxu0
        %1810 = vmatprep.mubr.f32.mxu0 0.0
        %1811 = vmatmul.mubr.f32.gmra.mxu0 %v406
        %v1812 = vpop.f32.mrf.mxu0
        %v1813 = vadd.f32 0.0, %v1812
        %v1814 = vpop.f32.mrf.mxu0
        %1815 = vmatprep.mubr.f32.mxu0 0.0
        %1816 = vmatmul.mubr.f32.gmra.mxu0 %v408
        %v1817 = vpop.f32.mrf.mxu0
        %v1818 = vadd.f32 0.0, %v1817
        %v1819 = vpop.f32.mrf.mxu0
        %1820 = vmatprep.mubr.f32.mxu0 0.0
        %1821 = vmatmul.mubr.f32.gmra.mxu0 %v410
        %v1822 = vpop.f32.mrf.mxu0
        %v1823 = vadd.f32 0.0, %v1822
        %v1824 = vpop.f32.mrf.mxu0
        %1825 = vmatprep.mubr.f32.mxu0 0.0
        %1826 = vmatmul.mubr.f32.gmra.mxu0 %v412
        %v1827 = vpop.f32.mrf.mxu0
        %v1828 = vadd.f32 0.0, %v1827
        %v1829 = vpop.f32.mrf.mxu0
        %1830 = vmatprep.mubr.f32.mxu0 0.0
        %1831 = vmatmul.mubr.f32.gmra.mxu0 %v414
        %v1832 = vpop.f32.mrf.mxu0
        %v1833 = vadd.f32 0.0, %v1832
        %v1834 = vpop.f32.mrf.mxu0
        %1835 = vmatprep.mubr.f32.mxu0 0.0
        %1836 = vmatmul.mubr.f32.gmra.mxu0 %v416
        %v1837 = vpop.f32.mrf.mxu0
        %v1838 = vadd.f32 0.0, %v1837
        %v1839 = vpop.f32.mrf.mxu0
        %1840 = vmatprep.mubr.f32.mxu0 0.0
        %1841 = vmatmul.mubr.f32.gmra.mxu0 %v418
        %v1842 = vpop.f32.mrf.mxu0
        %v1843 = vadd.f32 0.0, %v1842
        %v1844 = vpop.f32.mrf.mxu0
        %1845 = vmatprep.mubr.f32.mxu0 0.0
        %1846 = vmatmul.mubr.f32.gmra.mxu0 %v1624
        %v1847 = vpop.f32.mrf.mxu0
        %v1848 = vadd.f32 0.0, %v1847
        %v1849 = vpop.f32.mrf.mxu0
        %1850 = vmatprep.mubr.f32.mxu0 0.0
        %1851 = vmatmul.mubr.f32.gmra.mxu0 %v1626
        %v1852 = vpop.f32.mrf.mxu0
        %v1853 = vadd.f32 0.0, %v1852
        %v1854 = vpop.f32.mrf.mxu0
        %1855 = vdwg.mxu0
        %v1856 = vadd.f32 %v1584, %v1698
        %v1857 = vadd.f32 %v1585, %v1703
        %v1858 = vadd.f32 %v1586, %v1708
        %v1859 = vadd.f32 %v1587, %v1713
        %v1860 = vadd.f32 %v1588, %v1718
        %v1861 = vadd.f32 %v1589, %v1723
        %v1862 = vadd.f32 %v1590, %v1728
        %v1863 = vadd.f32 %v1591, %v1733
        %v1864 = vadd.f32 %v1592, %v1738
        %v1865 = vadd.f32 %v1593, %v1743
        %v1866 = vadd.f32 %v1594, %v1748
        %v1867 = vadd.f32 %v1595, %v1753
        %v1868 = vadd.f32 %v1596, %v1758
        %v1869 = vadd.f32 %v1597, %v1763
        %v1870 = vadd.f32 %v1598, %v1768
        %v1871 = vadd.f32 %v1599, %v1773
        %v1872 = vadd.f32 %v1600, %v1778
        %v1873 = vadd.f32 %v1601, %v1783
        %v1874 = vadd.f32 %v1602, %v1788
        %v1875 = vadd.f32 %v1603, %v1793
        %v1876 = vadd.f32 %v1604, %v1798
        %v1877 = vadd.f32 %v1605, %v1803
        %v1878 = vadd.f32 %v1606, %v1808
        %v1879 = vadd.f32 %v1607, %v1813
        %v1880 = vadd.f32 %v1608, %v1818
        %v1881 = vadd.f32 %v1609, %v1823
        %v1882 = vadd.f32 %v1610, %v1828
        %v1883 = vadd.f32 %v1611, %v1833
        %v1884 = vadd.f32 %v1612, %v1838
        %v1885 = vadd.f32 %v1613, %v1843
        %v1886 = vadd.f32 %v1614, %v1848
        %v1887 = vadd.f32 %v1615, %v1853
        %v1888 = vrot.slane %v217, 2
        %v1889 = vrot.slane %v218, 2
        %v1890 = vsel %vm941, %v1888, %v1889
        %v1891 = vrot.slane %v219, 2
        %v1892 = vsel %vm941, %v1889, %v1891
        %s1893 = scalar_lea.vmem %s1, 20
        %v1894 = vld [vmem:[%s1893] sm:$0xf]
        %v1895 = vsel %vm355, %v1890, 0
        %v1897 = vsel %vm355, %v1892, 0
        %v1900 = vsel %vm420, %v1894, 0
        %1902 = vmatprep.subr.mxu0 0.0
        %1903 = vmatpush1.msra.mxu0 0.0
        %1904 = vmatprep.subr.mxu0 0.0
        %1905 = vmatpush1.msra.mxu0 0.0
        %1906 = vmatprep.subr.mxu0 0.0
        %1907 = vmatpush1.msra.mxu0 0.0
        %1908 = vmatprep.subr.mxu0 0.0
        %1909 = vmatpush1.msra.mxu0 0.0
        %1910 = vmatprep.subr.mxu0 0.0
        %1911 = vmatpush1.msra.mxu0 0.0
        %1912 = vmatprep.subr.mxu0 0.0
        %1913 = vmatpush1.msra.mxu0 0.0
        %1914 = vmatprep.subr.mxu0 0.0
        %1915 = vmatpush1.msra.mxu0 0.0
        %1916 = vmatprep.subr.mxu0 0.0
        %1917 = vmatpush1.msra.mxu0 0.0
        %1918 = vmatprep.subr.mxu0 0.0
        %1919 = vmatpush1.msra.mxu0 0.0
        %1920 = vmatprep.subr.mxu0 0.0
        %1921 = vmatpush1.msra.mxu0 0.0
        %1922 = vmatprep.subr.mxu0 0.0
        %1923 = vmatpush1.msra.mxu0 0.0
        %1924 = vmatprep.subr.mxu0 0.0
        %1925 = vmatpush1.msra.mxu0 0.0
        %1926 = vmatprep.subr.mxu0 0.0
        %1927 = vmatpush1.msra.mxu0 0.0
        %1928 = vmatprep.subr.mxu0 0.0
        %1929 = vmatpush1.msra.mxu0 0.0
        %1930 = vmatprep.subr.mxu0 0.0
        %1931 = vmatpush1.msra.mxu0 0.0
        %1932 = vmatprep.subr.mxu0 0.0
        %1933 = vmatpush1.msra.mxu0 %v1900
        %1934 = vmatprep.subr.mxu0 0.0
        %1935 = vmatpush2.msra.mxu0 0.0
        %1936 = vmatprep.subr.mxu0 0.0
        %1937 = vmatpush2.msra.mxu0 0.0
        %1938 = vmatprep.subr.mxu0 0.0
        %1939 = vmatpush2.msra.mxu0 0.0
        %1940 = vmatprep.subr.mxu0 0.0
        %1941 = vmatpush2.msra.mxu0 0.0
        %1942 = vmatprep.subr.mxu0 0.0
        %1943 = vmatpush2.msra.mxu0 0.0
        %1944 = vmatprep.subr.mxu0 0.0
        %1945 = vmatpush2.msra.mxu0 0.0
        %1946 = vmatprep.subr.mxu0 0.0
        %1947 = vmatpush2.msra.mxu0 0.0
        %1948 = vmatprep.subr.mxu0 0.0
        %1949 = vmatpush2.msra.mxu0 0.0
        %1950 = vmatprep.subr.mxu0 0.0
        %1951 = vmatpush2.msra.mxu0 0.0
        %1952 = vmatprep.subr.mxu0 0.0
        %1953 = vmatpush2.msra.mxu0 0.0
        %1954 = vmatprep.subr.mxu0 0.0
        %1955 = vmatpush2.msra.mxu0 0.0
        %1956 = vmatprep.subr.mxu0 0.0
        %1957 = vmatpush2.msra.mxu0 0.0
        %1958 = vmatprep.subr.mxu0 0.0
        %1959 = vmatpush2.msra.mxu0 0.0
        %1960 = vmatprep.subr.mxu0 0.0
        %1961 = vmatpush2.msra.mxu0 0.0
        %1962 = vmatprep.subr.mxu0 0.0
        %1963 = vmatpush2.msra.mxu0 0.0
        %1964 = vmatprep.subr.mxu0 0.0
        %1965 = vmatpush2.msra.mxu0 0.0
        %1966 = vmatprep.mubr.f32.mxu0 0.0
        %1967 = vmatmul.mubr.f32.gmra.mxu0 %v1028
        %v1968 = vpop.f32.mrf.mxu0
        %v1969 = vadd.f32 0.0, %v1968
        %v1970 = vpop.f32.mrf.mxu0
        %1971 = vmatprep.mubr.f32.mxu0 0.0
        %1972 = vmatmul.mubr.f32.gmra.mxu0 %v1030
        %v1973 = vpop.f32.mrf.mxu0
        %v1974 = vadd.f32 0.0, %v1973
        %v1975 = vpop.f32.mrf.mxu0
        %1976 = vmatprep.mubr.f32.mxu0 0.0
        %1977 = vmatmul.mubr.f32.gmra.mxu0 %v1032
        %v1978 = vpop.f32.mrf.mxu0
        %v1979 = vadd.f32 0.0, %v1978
        %v1980 = vpop.f32.mrf.mxu0
        %1981 = vmatprep.mubr.f32.mxu0 0.0
        %1982 = vmatmul.mubr.f32.gmra.mxu0 %v1034
        %v1983 = vpop.f32.mrf.mxu0
        %v1984 = vadd.f32 0.0, %v1983
        %v1985 = vpop.f32.mrf.mxu0
        %1986 = vmatprep.mubr.f32.mxu0 0.0
        %1987 = vmatmul.mubr.f32.gmra.mxu0 %v1036
        %v1988 = vpop.f32.mrf.mxu0
        %v1989 = vadd.f32 0.0, %v1988
        %v1990 = vpop.f32.mrf.mxu0
        %1991 = vmatprep.mubr.f32.mxu0 0.0
        %1992 = vmatmul.mubr.f32.gmra.mxu0 %v1038
        %v1993 = vpop.f32.mrf.mxu0
        %v1994 = vadd.f32 0.0, %v1993
        %v1995 = vpop.f32.mrf.mxu0
        %1996 = vmatprep.mubr.f32.mxu0 0.0
        %1997 = vmatmul.mubr.f32.gmra.mxu0 %v1040
        %v1998 = vpop.f32.mrf.mxu0
        %v1999 = vadd.f32 0.0, %v1998
        %v2000 = vpop.f32.mrf.mxu0
        %2001 = vmatprep.mubr.f32.mxu0 0.0
        %2002 = vmatmul.mubr.f32.gmra.mxu0 %v1042
        %v2003 = vpop.f32.mrf.mxu0
        %v2004 = vadd.f32 0.0, %v2003
        %v2005 = vpop.f32.mrf.mxu0
        %2006 = vmatprep.mubr.f32.mxu0 0.0
        %2007 = vmatmul.mubr.f32.gmra.mxu0 %v1044
        %v2008 = vpop.f32.mrf.mxu0
        %v2009 = vadd.f32 0.0, %v2008
        %v2010 = vpop.f32.mrf.mxu0
        %2011 = vmatprep.mubr.f32.mxu0 0.0
        %2012 = vmatmul.mubr.f32.gmra.mxu0 %v1046
        %v2013 = vpop.f32.mrf.mxu0
        %v2014 = vadd.f32 0.0, %v2013
        %v2015 = vpop.f32.mrf.mxu0
        %2016 = vmatprep.mubr.f32.mxu0 0.0
        %2017 = vmatmul.mubr.f32.gmra.mxu0 %v1048
        %v2018 = vpop.f32.mrf.mxu0
        %v2019 = vadd.f32 0.0, %v2018
        %v2020 = vpop.f32.mrf.mxu0
        %2021 = vmatprep.mubr.f32.mxu0 0.0
        %2022 = vmatmul.mubr.f32.gmra.mxu0 %v1050
        %v2023 = vpop.f32.mrf.mxu0
        %v2024 = vadd.f32 0.0, %v2023
        %v2025 = vpop.f32.mrf.mxu0
        %2026 = vmatprep.mubr.f32.mxu0 0.0
        %2027 = vmatmul.mubr.f32.gmra.mxu0 %v1052
        %v2028 = vpop.f32.mrf.mxu0
        %v2029 = vadd.f32 0.0, %v2028
        %v2030 = vpop.f32.mrf.mxu0
        %2031 = vmatprep.mubr.f32.mxu0 0.0
        %2032 = vmatmul.mubr.f32.gmra.mxu0 %v1054
        %v2033 = vpop.f32.mrf.mxu0
        %v2034 = vadd.f32 0.0, %v2033
        %v2035 = vpop.f32.mrf.mxu0
        %2036 = vmatprep.mubr.f32.mxu0 0.0
        %2037 = vmatmul.mubr.f32.gmra.mxu0 %v1056
        %v2038 = vpop.f32.mrf.mxu0
        %v2039 = vadd.f32 0.0, %v2038
        %v2040 = vpop.f32.mrf.mxu0
        %2041 = vmatprep.mubr.f32.mxu0 0.0
        %2042 = vmatmul.mubr.f32.gmra.mxu0 %v1058
        %v2043 = vpop.f32.mrf.mxu0
        %v2044 = vadd.f32 0.0, %v2043
        %v2045 = vpop.f32.mrf.mxu0
        %2046 = vmatprep.mubr.f32.mxu0 0.0
        %2047 = vmatmul.mubr.f32.gmra.mxu0 %v1060
        %v2048 = vpop.f32.mrf.mxu0
        %v2049 = vadd.f32 0.0, %v2048
        %v2050 = vpop.f32.mrf.mxu0
        %2051 = vmatprep.mubr.f32.mxu0 0.0
        %2052 = vmatmul.mubr.f32.gmra.mxu0 %v1062
        %v2053 = vpop.f32.mrf.mxu0
        %v2054 = vadd.f32 0.0, %v2053
        %v2055 = vpop.f32.mrf.mxu0
        %2056 = vmatprep.mubr.f32.mxu0 0.0
        %2057 = vmatmul.mubr.f32.gmra.mxu0 %v1064
        %v2058 = vpop.f32.mrf.mxu0
        %v2059 = vadd.f32 0.0, %v2058
        %v2060 = vpop.f32.mrf.mxu0
        %2061 = vmatprep.mubr.f32.mxu0 0.0
        %2062 = vmatmul.mubr.f32.gmra.mxu0 %v1066
        %v2063 = vpop.f32.mrf.mxu0
        %v2064 = vadd.f32 0.0, %v2063
        %v2065 = vpop.f32.mrf.mxu0
        %2066 = vmatprep.mubr.f32.mxu0 0.0
        %2067 = vmatmul.mubr.f32.gmra.mxu0 %v1068
        %v2068 = vpop.f32.mrf.mxu0
        %v2069 = vadd.f32 0.0, %v2068
        %v2070 = vpop.f32.mrf.mxu0
        %2071 = vmatprep.mubr.f32.mxu0 0.0
        %2072 = vmatmul.mubr.f32.gmra.mxu0 %v1070
        %v2073 = vpop.f32.mrf.mxu0
        %v2074 = vadd.f32 0.0, %v2073
        %v2075 = vpop.f32.mrf.mxu0
        %2076 = vmatprep.mubr.f32.mxu0 0.0
        %2077 = vmatmul.mubr.f32.gmra.mxu0 %v1072
        %v2078 = vpop.f32.mrf.mxu0
        %v2079 = vadd.f32 0.0, %v2078
        %v2080 = vpop.f32.mrf.mxu0
        %2081 = vmatprep.mubr.f32.mxu0 0.0
        %2082 = vmatmul.mubr.f32.gmra.mxu0 %v1074
        %v2083 = vpop.f32.mrf.mxu0
        %v2084 = vadd.f32 0.0, %v2083
        %v2085 = vpop.f32.mrf.mxu0
        %2086 = vmatprep.mubr.f32.mxu0 0.0
        %2087 = vmatmul.mubr.f32.gmra.mxu0 %v1076
        %v2088 = vpop.f32.mrf.mxu0
        %v2089 = vadd.f32 0.0, %v2088
        %v2090 = vpop.f32.mrf.mxu0
        %2091 = vmatprep.mubr.f32.mxu0 0.0
        %2092 = vmatmul.mubr.f32.gmra.mxu0 %v1078
        %v2093 = vpop.f32.mrf.mxu0
        %v2094 = vadd.f32 0.0, %v2093
        %v2095 = vpop.f32.mrf.mxu0
        %2096 = vmatprep.mubr.f32.mxu0 0.0
        %2097 = vmatmul.mubr.f32.gmra.mxu0 %v1080
        %v2098 = vpop.f32.mrf.mxu0
        %v2099 = vadd.f32 0.0, %v2098
        %v2100 = vpop.f32.mrf.mxu0
        %2101 = vmatprep.mubr.f32.mxu0 0.0
        %2102 = vmatmul.mubr.f32.gmra.mxu0 %v1082
        %v2103 = vpop.f32.mrf.mxu0
        %v2104 = vadd.f32 0.0, %v2103
        %v2105 = vpop.f32.mrf.mxu0
        %2106 = vmatprep.mubr.f32.mxu0 0.0
        %2107 = vmatmul.mubr.f32.gmra.mxu0 %v1084
        %v2108 = vpop.f32.mrf.mxu0
        %v2109 = vadd.f32 0.0, %v2108
        %v2110 = vpop.f32.mrf.mxu0
        %2111 = vmatprep.mubr.f32.mxu0 0.0
        %2112 = vmatmul.mubr.f32.gmra.mxu0 %v1086
        %v2113 = vpop.f32.mrf.mxu0
        %v2114 = vadd.f32 0.0, %v2113
        %v2115 = vpop.f32.mrf.mxu0
        %2116 = vmatprep.mubr.f32.mxu0 0.0
        %2117 = vmatmul.mubr.f32.gmra.mxu0 %v1895
        %v2118 = vpop.f32.mrf.mxu0
        %v2119 = vadd.f32 0.0, %v2118
        %v2120 = vpop.f32.mrf.mxu0
        %2121 = vmatprep.mubr.f32.mxu0 0.0
        %2122 = vmatmul.mubr.f32.gmra.mxu0 %v1897
        %v2123 = vpop.f32.mrf.mxu0
        %v2124 = vadd.f32 0.0, %v2123
        %v2125 = vpop.f32.mrf.mxu0
        %2126 = vdwg.mxu0
        %v2127 = vadd.f32 %v1856, %v1969
        %v2128 = vadd.f32 %v1857, %v1974
        %v2129 = vadd.f32 %v1858, %v1979
        %v2130 = vadd.f32 %v1859, %v1984
        %v2131 = vadd.f32 %v1860, %v1989
        %v2132 = vadd.f32 %v1861, %v1994
        %v2133 = vadd.f32 %v1862, %v1999
        %v2134 = vadd.f32 %v1863, %v2004
        %v2135 = vadd.f32 %v1864, %v2009
        %v2136 = vadd.f32 %v1865, %v2014
        %v2137 = vadd.f32 %v1866, %v2019
        %v2138 = vadd.f32 %v1867, %v2024
        %v2139 = vadd.f32 %v1868, %v2029
        %v2140 = vadd.f32 %v1869, %v2034
        %v2141 = vadd.f32 %v1870, %v2039
        %v2142 = vadd.f32 %v1871, %v2044
        %v2143 = vadd.f32 %v1872, %v2049
        %v2144 = vadd.f32 %v1873, %v2054
        %v2145 = vadd.f32 %v1874, %v2059
        %v2146 = vadd.f32 %v1875, %v2064
        %v2147 = vadd.f32 %v1876, %v2069
        %v2148 = vadd.f32 %v1877, %v2074
        %v2149 = vadd.f32 %v1878, %v2079
        %v2150 = vadd.f32 %v1879, %v2084
        %v2151 = vadd.f32 %v1880, %v2089
        %v2152 = vadd.f32 %v1881, %v2094
        %v2153 = vadd.f32 %v1882, %v2099
        %v2154 = vadd.f32 %v1883, %v2104
        %v2155 = vadd.f32 %v1884, %v2109
        %v2156 = vadd.f32 %v1885, %v2114
        %v2157 = vadd.f32 %v1886, %v2119
        %v2158 = vadd.f32 %v1887, %v2124
        %s2159 = scalar_lea.vmem %s1, 24
        %v2160 = vld [vmem:[%s2159] sm:$0xf]
        %v2162 = vsel %vm355, %v220, 0
        %v2165 = vsel %vm355, %v221, 0
        %v2168 = vsel %vm420, %v2160, 0
        %2170 = vmatprep.subr.mxu0 0.0
        %2171 = vmatpush1.msra.mxu0 0.0
        %2172 = vmatprep.subr.mxu0 0.0
        %2173 = vmatpush1.msra.mxu0 0.0
        %2174 = vmatprep.subr.mxu0 0.0
        %2175 = vmatpush1.msra.mxu0 0.0
        %2176 = vmatprep.subr.mxu0 0.0
        %2177 = vmatpush1.msra.mxu0 0.0
        %2178 = vmatprep.subr.mxu0 0.0
        %2179 = vmatpush1.msra.mxu0 0.0
        %2180 = vmatprep.subr.mxu0 0.0
        %2181 = vmatpush1.msra.mxu0 0.0
        %2182 = vmatprep.subr.mxu0 0.0
        %2183 = vmatpush1.msra.mxu0 0.0
        %2184 = vmatprep.subr.mxu0 0.0
        %2185 = vmatpush1.msra.mxu0 0.0
        %2186 = vmatprep.subr.mxu0 0.0
        %2187 = vmatpush1.msra.mxu0 0.0
        %2188 = vmatprep.subr.mxu0 0.0
        %2189 = vmatpush1.msra.mxu0 0.0
        %2190 = vmatprep.subr.mxu0 0.0
        %2191 = vmatpush1.msra.mxu0 0.0
        %2192 = vmatprep.subr.mxu0 0.0
        %2193 = vmatpush1.msra.mxu0 0.0
        %2194 = vmatprep.subr.mxu0 0.0
        %2195 = vmatpush1.msra.mxu0 0.0
        %2196 = vmatprep.subr.mxu0 0.0
        %2197 = vmatpush1.msra.mxu0 0.0
        %2198 = vmatprep.subr.mxu0 0.0
        %2199 = vmatpush1.msra.mxu0 0.0
        %2200 = vmatprep.subr.mxu0 0.0
        %2201 = vmatpush1.msra.mxu0 %v2168
        %2202 = vmatprep.subr.mxu0 0.0
        %2203 = vmatpush2.msra.mxu0 0.0
        %2204 = vmatprep.subr.mxu0 0.0
        %2205 = vmatpush2.msra.mxu0 0.0
        %2206 = vmatprep.subr.mxu0 0.0
        %2207 = vmatpush2.msra.mxu0 0.0
        %2208 = vmatprep.subr.mxu0 0.0
        %2209 = vmatpush2.msra.mxu0 0.0
        %2210 = vmatprep.subr.mxu0 0.0
        %2211 = vmatpush2.msra.mxu0 0.0
        %2212 = vmatprep.subr.mxu0 0.0
        %2213 = vmatpush2.msra.mxu0 0.0
        %2214 = vmatprep.subr.mxu0 0.0
        %2215 = vmatpush2.msra.mxu0 0.0
        %2216 = vmatprep.subr.mxu0 0.0
        %2217 = vmatpush2.msra.mxu0 0.0
        %2218 = vmatprep.subr.mxu0 0.0
        %2219 = vmatpush2.msra.mxu0 0.0
        %2220 = vmatprep.subr.mxu0 0.0
        %2221 = vmatpush2.msra.mxu0 0.0
        %2222 = vmatprep.subr.mxu0 0.0
        %2223 = vmatpush2.msra.mxu0 0.0
        %2224 = vmatprep.subr.mxu0 0.0
        %2225 = vmatpush2.msra.mxu0 0.0
        %2226 = vmatprep.subr.mxu0 0.0
        %2227 = vmatpush2.msra.mxu0 0.0
        %2228 = vmatprep.subr.mxu0 0.0
        %2229 = vmatpush2.msra.mxu0 0.0
        %2230 = vmatprep.subr.mxu0 0.0
        %2231 = vmatpush2.msra.mxu0 0.0
        %2232 = vmatprep.subr.mxu0 0.0
        %2233 = vmatpush2.msra.mxu0 0.0
        %2234 = vmatprep.mubr.f32.mxu0 0.0
        %2235 = vmatmul.mubr.f32.gmra.mxu0 %v657
        %v2236 = vpop.f32.mrf.mxu0
        %v2237 = vadd.f32 0.0, %v2236
        %v2238 = vpop.f32.mrf.mxu0
        %2239 = vmatprep.mubr.f32.mxu0 0.0
        %2240 = vmatmul.mubr.f32.gmra.mxu0 %v659
        %v2241 = vpop.f32.mrf.mxu0
        %v2242 = vadd.f32 0.0, %v2241
        %v2243 = vpop.f32.mrf.mxu0
        %2244 = vmatprep.mubr.f32.mxu0 0.0
        %2245 = vmatmul.mubr.f32.gmra.mxu0 %v661
        %v2246 = vpop.f32.mrf.mxu0
        %v2247 = vadd.f32 0.0, %v2246
        %v2248 = vpop.f32.mrf.mxu0
        %2249 = vmatprep.mubr.f32.mxu0 0.0
        %2250 = vmatmul.mubr.f32.gmra.mxu0 %v663
        %v2251 = vpop.f32.mrf.mxu0
        %v2252 = vadd.f32 0.0, %v2251
        %v2253 = vpop.f32.mrf.mxu0
        %2254 = vmatprep.mubr.f32.mxu0 0.0
        %2255 = vmatmul.mubr.f32.gmra.mxu0 %v665
        %v2256 = vpop.f32.mrf.mxu0
        %v2257 = vadd.f32 0.0, %v2256
        %v2258 = vpop.f32.mrf.mxu0
        %2259 = vmatprep.mubr.f32.mxu0 0.0
        %2260 = vmatmul.mubr.f32.gmra.mxu0 %v667
        %v2261 = vpop.f32.mrf.mxu0
        %v2262 = vadd.f32 0.0, %v2261
        %v2263 = vpop.f32.mrf.mxu0
        %2264 = vmatprep.mubr.f32.mxu0 0.0
        %2265 = vmatmul.mubr.f32.gmra.mxu0 %v669
        %v2266 = vpop.f32.mrf.mxu0
        %v2267 = vadd.f32 0.0, %v2266
        %v2268 = vpop.f32.mrf.mxu0
        %2269 = vmatprep.mubr.f32.mxu0 0.0
        %2270 = vmatmul.mubr.f32.gmra.mxu0 %v671
        %v2271 = vpop.f32.mrf.mxu0
        %v2272 = vadd.f32 0.0, %v2271
        %v2273 = vpop.f32.mrf.mxu0
        %2274 = vmatprep.mubr.f32.mxu0 0.0
        %2275 = vmatmul.mubr.f32.gmra.mxu0 %v673
        %v2276 = vpop.f32.mrf.mxu0
        %v2277 = vadd.f32 0.0, %v2276
        %v2278 = vpop.f32.mrf.mxu0
        %2279 = vmatprep.mubr.f32.mxu0 0.0
        %2280 = vmatmul.mubr.f32.gmra.mxu0 %v675
        %v2281 = vpop.f32.mrf.mxu0
        %v2282 = vadd.f32 0.0, %v2281
        %v2283 = vpop.f32.mrf.mxu0
        %2284 = vmatprep.mubr.f32.mxu0 0.0
        %2285 = vmatmul.mubr.f32.gmra.mxu0 %v677
        %v2286 = vpop.f32.mrf.mxu0
        %v2287 = vadd.f32 0.0, %v2286
        %v2288 = vpop.f32.mrf.mxu0
        %2289 = vmatprep.mubr.f32.mxu0 0.0
        %2290 = vmatmul.mubr.f32.gmra.mxu0 %v679
        %v2291 = vpop.f32.mrf.mxu0
        %v2292 = vadd.f32 0.0, %v2291
        %v2293 = vpop.f32.mrf.mxu0
        %2294 = vmatprep.mubr.f32.mxu0 0.0
        %2295 = vmatmul.mubr.f32.gmra.mxu0 %v681
        %v2296 = vpop.f32.mrf.mxu0
        %v2297 = vadd.f32 0.0, %v2296
        %v2298 = vpop.f32.mrf.mxu0
        %2299 = vmatprep.mubr.f32.mxu0 0.0
        %2300 = vmatmul.mubr.f32.gmra.mxu0 %v683
        %v2301 = vpop.f32.mrf.mxu0
        %v2302 = vadd.f32 0.0, %v2301
        %v2303 = vpop.f32.mrf.mxu0
        %2304 = vmatprep.mubr.f32.mxu0 0.0
        %2305 = vmatmul.mubr.f32.gmra.mxu0 %v685
        %v2306 = vpop.f32.mrf.mxu0
        %v2307 = vadd.f32 0.0, %v2306
        %v2308 = vpop.f32.mrf.mxu0
        %2309 = vmatprep.mubr.f32.mxu0 0.0
        %2310 = vmatmul.mubr.f32.gmra.mxu0 %v687
        %v2311 = vpop.f32.mrf.mxu0
        %v2312 = vadd.f32 0.0, %v2311
        %v2313 = vpop.f32.mrf.mxu0
        %2314 = vmatprep.mubr.f32.mxu0 0.0
        %2315 = vmatmul.mubr.f32.gmra.mxu0 %v689
        %v2316 = vpop.f32.mrf.mxu0
        %v2317 = vadd.f32 0.0, %v2316
        %v2318 = vpop.f32.mrf.mxu0
        %2319 = vmatprep.mubr.f32.mxu0 0.0
        %2320 = vmatmul.mubr.f32.gmra.mxu0 %v691
        %v2321 = vpop.f32.mrf.mxu0
        %v2322 = vadd.f32 0.0, %v2321
        %v2323 = vpop.f32.mrf.mxu0
        %2324 = vmatprep.mubr.f32.mxu0 0.0
        %2325 = vmatmul.mubr.f32.gmra.mxu0 %v693
        %v2326 = vpop.f32.mrf.mxu0
        %v2327 = vadd.f32 0.0, %v2326
        %v2328 = vpop.f32.mrf.mxu0
        %2329 = vmatprep.mubr.f32.mxu0 0.0
        %2330 = vmatmul.mubr.f32.gmra.mxu0 %v695
        %v2331 = vpop.f32.mrf.mxu0
        %v2332 = vadd.f32 0.0, %v2331
        %v2333 = vpop.f32.mrf.mxu0
        %2334 = vmatprep.mubr.f32.mxu0 0.0
        %2335 = vmatmul.mubr.f32.gmra.mxu0 %v697
        %v2336 = vpop.f32.mrf.mxu0
        %v2337 = vadd.f32 0.0, %v2336
        %v2338 = vpop.f32.mrf.mxu0
        %2339 = vmatprep.mubr.f32.mxu0 0.0
        %2340 = vmatmul.mubr.f32.gmra.mxu0 %v699
        %v2341 = vpop.f32.mrf.mxu0
        %v2342 = vadd.f32 0.0, %v2341
        %v2343 = vpop.f32.mrf.mxu0
        %2344 = vmatprep.mubr.f32.mxu0 0.0
        %2345 = vmatmul.mubr.f32.gmra.mxu0 %v701
        %v2346 = vpop.f32.mrf.mxu0
        %v2347 = vadd.f32 0.0, %v2346
        %v2348 = vpop.f32.mrf.mxu0
        %2349 = vmatprep.mubr.f32.mxu0 0.0
        %2350 = vmatmul.mubr.f32.gmra.mxu0 %v703
        %v2351 = vpop.f32.mrf.mxu0
        %v2352 = vadd.f32 0.0, %v2351
        %v2353 = vpop.f32.mrf.mxu0
        %2354 = vmatprep.mubr.f32.mxu0 0.0
        %2355 = vmatmul.mubr.f32.gmra.mxu0 %v705
        %v2356 = vpop.f32.mrf.mxu0
        %v2357 = vadd.f32 0.0, %v2356
        %v2358 = vpop.f32.mrf.mxu0
        %2359 = vmatprep.mubr.f32.mxu0 0.0
        %2360 = vmatmul.mubr.f32.gmra.mxu0 %v707
        %v2361 = vpop.f32.mrf.mxu0
        %v2362 = vadd.f32 0.0, %v2361
        %v2363 = vpop.f32.mrf.mxu0
        %2364 = vmatprep.mubr.f32.mxu0 0.0
        %2365 = vmatmul.mubr.f32.gmra.mxu0 %v709
        %v2366 = vpop.f32.mrf.mxu0
        %v2367 = vadd.f32 0.0, %v2366
        %v2368 = vpop.f32.mrf.mxu0
        %2369 = vmatprep.mubr.f32.mxu0 0.0
        %2370 = vmatmul.mubr.f32.gmra.mxu0 %v711
        %v2371 = vpop.f32.mrf.mxu0
        %v2372 = vadd.f32 0.0, %v2371
        %v2373 = vpop.f32.mrf.mxu0
        %2374 = vmatprep.mubr.f32.mxu0 0.0
        %2375 = vmatmul.mubr.f32.gmra.mxu0 %v1351
        %v2376 = vpop.f32.mrf.mxu0
        %v2377 = vadd.f32 0.0, %v2376
        %v2378 = vpop.f32.mrf.mxu0
        %2379 = vmatprep.mubr.f32.mxu0 0.0
        %2380 = vmatmul.mubr.f32.gmra.mxu0 %v1354
        %v2381 = vpop.f32.mrf.mxu0
        %v2382 = vadd.f32 0.0, %v2381
        %v2383 = vpop.f32.mrf.mxu0
        %2384 = vmatprep.mubr.f32.mxu0 0.0
        %2385 = vmatmul.mubr.f32.gmra.mxu0 %v2162
        %v2386 = vpop.f32.mrf.mxu0
        %v2387 = vadd.f32 0.0, %v2386
        %v2388 = vpop.f32.mrf.mxu0
        %2389 = vmatprep.mubr.f32.mxu0 0.0
        %2390 = vmatmul.mubr.f32.gmra.mxu0 %v2165
        %v2391 = vpop.f32.mrf.mxu0
        %v2392 = vadd.f32 0.0, %v2391
        %v2393 = vpop.f32.mrf.mxu0
        %2394 = vdwg.mxu0
        %v2395 = vadd.f32 %v2127, %v2237
        %v2396 = vadd.f32 %v2128, %v2242
        %v2397 = vadd.f32 %v2129, %v2247
        %v2398 = vadd.f32 %v2130, %v2252
        %v2399 = vadd.f32 %v2131, %v2257
        %v2400 = vadd.f32 %v2132, %v2262
        %v2401 = vadd.f32 %v2133, %v2267
        %v2402 = vadd.f32 %v2134, %v2272
        %v2403 = vadd.f32 %v2135, %v2277
        %v2404 = vadd.f32 %v2136, %v2282
        %v2405 = vadd.f32 %v2137, %v2287
        %v2406 = vadd.f32 %v2138, %v2292
        %v2407 = vadd.f32 %v2139, %v2297
        %v2408 = vadd.f32 %v2140, %v2302
        %v2409 = vadd.f32 %v2141, %v2307
        %v2410 = vadd.f32 %v2142, %v2312
        %v2411 = vadd.f32 %v2143, %v2317
        %v2412 = vadd.f32 %v2144, %v2322
        %v2413 = vadd.f32 %v2145, %v2327
        %v2414 = vadd.f32 %v2146, %v2332
        %v2415 = vadd.f32 %v2147, %v2337
        %v2416 = vadd.f32 %v2148, %v2342
        %v2417 = vadd.f32 %v2149, %v2347
        %v2418 = vadd.f32 %v2150, %v2352
        %v2419 = vadd.f32 %v2151, %v2357
        %v2420 = vadd.f32 %v2152, %v2362
        %v2421 = vadd.f32 %v2153, %v2367
        %v2422 = vadd.f32 %v2154, %v2372
        %v2423 = vadd.f32 %v2155, %v2377
        %v2424 = vadd.f32 %v2156, %v2382
        %v2425 = vadd.f32 %v2157, %v2387
        %v2426 = vadd.f32 %v2158, %v2392
        %v2428 = vrot.slane %v220, 1
        %v2429 = vrot.slane %v221, 1
        %v2430 = vsel %vm272, %v2428, %v2429
        %v2431 = vrot.slane %v222, 1
        %v2432 = vsel %vm272, %v2429, %v2431
        %s2433 = scalar_lea.vmem %s1, 28
        %v2434 = vld [vmem:[%s2433] sm:$0xf]
        %v2435 = vsel %vm355, %v2430, 0
        %v2437 = vsel %vm355, %v2432, 0
        %v2440 = vsel %vm420, %v2434, 0
        %2442 = vmatprep.subr.mxu0 0.0
        %2443 = vmatpush1.msra.mxu0 0.0
        %2444 = vmatprep.subr.mxu0 0.0
        %2445 = vmatpush1.msra.mxu0 0.0
        %2446 = vmatprep.subr.mxu0 0.0
        %2447 = vmatpush1.msra.mxu0 0.0
        %2448 = vmatprep.subr.mxu0 0.0
        %2449 = vmatpush1.msra.mxu0 0.0
        %2450 = vmatprep.subr.mxu0 0.0
        %2451 = vmatpush1.msra.mxu0 0.0
        %2452 = vmatprep.subr.mxu0 0.0
        %2453 = vmatpush1.msra.mxu0 0.0
        %2454 = vmatprep.subr.mxu0 0.0
        %2455 = vmatpush1.msra.mxu0 0.0
        %2456 = vmatprep.subr.mxu0 0.0
        %2457 = vmatpush1.msra.mxu0 0.0
        %2458 = vmatprep.subr.mxu0 0.0
        %2459 = vmatpush1.msra.mxu0 0.0
        %2460 = vmatprep.subr.mxu0 0.0
        %2461 = vmatpush1.msra.mxu0 0.0
        %2462 = vmatprep.subr.mxu0 0.0
        %2463 = vmatpush1.msra.mxu0 0.0
        %2464 = vmatprep.subr.mxu0 0.0
        %2465 = vmatpush1.msra.mxu0 0.0
        %2466 = vmatprep.subr.mxu0 0.0
        %2467 = vmatpush1.msra.mxu0 0.0
        %2468 = vmatprep.subr.mxu0 0.0
        %2469 = vmatpush1.msra.mxu0 0.0
        %2470 = vmatprep.subr.mxu0 0.0
        %2471 = vmatpush1.msra.mxu0 0.0
        %2472 = vmatprep.subr.mxu0 0.0
        %2473 = vmatpush1.msra.mxu0 %v2440
        %2474 = vmatprep.subr.mxu0 0.0
        %2475 = vmatpush2.msra.mxu0 0.0
        %2476 = vmatprep.subr.mxu0 0.0
        %2477 = vmatpush2.msra.mxu0 0.0
        %2478 = vmatprep.subr.mxu0 0.0
        %2479 = vmatpush2.msra.mxu0 0.0
        %2480 = vmatprep.subr.mxu0 0.0
        %2481 = vmatpush2.msra.mxu0 0.0
        %2482 = vmatprep.subr.mxu0 0.0
        %2483 = vmatpush2.msra.mxu0 0.0
        %2484 = vmatprep.subr.mxu0 0.0
        %2485 = vmatpush2.msra.mxu0 0.0
        %2486 = vmatprep.subr.mxu0 0.0
        %2487 = vmatpush2.msra.mxu0 0.0
        %2488 = vmatprep.subr.mxu0 0.0
        %2489 = vmatpush2.msra.mxu0 0.0
        %2490 = vmatprep.subr.mxu0 0.0
        %2491 = vmatpush2.msra.mxu0 0.0
        %2492 = vmatprep.subr.mxu0 0.0
        %2493 = vmatpush2.msra.mxu0 0.0
        %2494 = vmatprep.subr.mxu0 0.0
        %2495 = vmatpush2.msra.mxu0 0.0
        %2496 = vmatprep.subr.mxu0 0.0
        %2497 = vmatpush2.msra.mxu0 0.0
        %2498 = vmatprep.subr.mxu0 0.0
        %2499 = vmatpush2.msra.mxu0 0.0
        %2500 = vmatprep.subr.mxu0 0.0
        %2501 = vmatpush2.msra.mxu0 0.0
        %2502 = vmatprep.subr.mxu0 0.0
        %2503 = vmatpush2.msra.mxu0 0.0
        %2504 = vmatprep.subr.mxu0 0.0
        %2505 = vmatpush2.msra.mxu0 0.0
        %2506 = vmatprep.mubr.f32.mxu0 0.0
        %2507 = vmatmul.mubr.f32.gmra.mxu0 %v364
        %v2508 = vpop.f32.mrf.mxu0
        %v2509 = vadd.f32 0.0, %v2508
        %v2510 = vpop.f32.mrf.mxu0
        %2511 = vmatprep.mubr.f32.mxu0 0.0
        %2512 = vmatmul.mubr.f32.gmra.mxu0 %v366
        %v2513 = vpop.f32.mrf.mxu0
        %v2514 = vadd.f32 0.0, %v2513
        %v2515 = vpop.f32.mrf.mxu0
        %2516 = vmatprep.mubr.f32.mxu0 0.0
        %2517 = vmatmul.mubr.f32.gmra.mxu0 %v368
        %v2518 = vpop.f32.mrf.mxu0
        %v2519 = vadd.f32 0.0, %v2518
        %v2520 = vpop.f32.mrf.mxu0
        %2521 = vmatprep.mubr.f32.mxu0 0.0
        %2522 = vmatmul.mubr.f32.gmra.mxu0 %v370
        %v2523 = vpop.f32.mrf.mxu0
        %v2524 = vadd.f32 0.0, %v2523
        %v2525 = vpop.f32.mrf.mxu0
        %2526 = vmatprep.mubr.f32.mxu0 0.0
        %2527 = vmatmul.mubr.f32.gmra.mxu0 %v372
        %v2528 = vpop.f32.mrf.mxu0
        %v2529 = vadd.f32 0.0, %v2528
        %v2530 = vpop.f32.mrf.mxu0
        %2531 = vmatprep.mubr.f32.mxu0 0.0
        %2532 = vmatmul.mubr.f32.gmra.mxu0 %v374
        %v2533 = vpop.f32.mrf.mxu0
        %v2534 = vadd.f32 0.0, %v2533
        %v2535 = vpop.f32.mrf.mxu0
        %2536 = vmatprep.mubr.f32.mxu0 0.0
        %2537 = vmatmul.mubr.f32.gmra.mxu0 %v376
        %v2538 = vpop.f32.mrf.mxu0
        %v2539 = vadd.f32 0.0, %v2538
        %v2540 = vpop.f32.mrf.mxu0
        %2541 = vmatprep.mubr.f32.mxu0 0.0
        %2542 = vmatmul.mubr.f32.gmra.mxu0 %v378
        %v2543 = vpop.f32.mrf.mxu0
        %v2544 = vadd.f32 0.0, %v2543
        %v2545 = vpop.f32.mrf.mxu0
        %2546 = vmatprep.mubr.f32.mxu0 0.0
        %2547 = vmatmul.mubr.f32.gmra.mxu0 %v380
        %v2548 = vpop.f32.mrf.mxu0
        %v2549 = vadd.f32 0.0, %v2548
        %v2550 = vpop.f32.mrf.mxu0
        %2551 = vmatprep.mubr.f32.mxu0 0.0
        %2552 = vmatmul.mubr.f32.gmra.mxu0 %v382
        %v2553 = vpop.f32.mrf.mxu0
        %v2554 = vadd.f32 0.0, %v2553
        %v2555 = vpop.f32.mrf.mxu0
        %2556 = vmatprep.mubr.f32.mxu0 0.0
        %2557 = vmatmul.mubr.f32.gmra.mxu0 %v384
        %v2558 = vpop.f32.mrf.mxu0
        %v2559 = vadd.f32 0.0, %v2558
        %v2560 = vpop.f32.mrf.mxu0
        %2561 = vmatprep.mubr.f32.mxu0 0.0
        %2562 = vmatmul.mubr.f32.gmra.mxu0 %v386
        %v2563 = vpop.f32.mrf.mxu0
        %v2564 = vadd.f32 0.0, %v2563
        %v2565 = vpop.f32.mrf.mxu0
        %2566 = vmatprep.mubr.f32.mxu0 0.0
        %2567 = vmatmul.mubr.f32.gmra.mxu0 %v388
        %v2568 = vpop.f32.mrf.mxu0
        %v2569 = vadd.f32 0.0, %v2568
        %v2570 = vpop.f32.mrf.mxu0
        %2571 = vmatprep.mubr.f32.mxu0 0.0
        %2572 = vmatmul.mubr.f32.gmra.mxu0 %v390
        %v2573 = vpop.f32.mrf.mxu0
        %v2574 = vadd.f32 0.0, %v2573
        %v2575 = vpop.f32.mrf.mxu0
        %2576 = vmatprep.mubr.f32.mxu0 0.0
        %2577 = vmatmul.mubr.f32.gmra.mxu0 %v392
        %v2578 = vpop.f32.mrf.mxu0
        %v2579 = vadd.f32 0.0, %v2578
        %v2580 = vpop.f32.mrf.mxu0
        %2581 = vmatprep.mubr.f32.mxu0 0.0
        %2582 = vmatmul.mubr.f32.gmra.mxu0 %v394
        %v2583 = vpop.f32.mrf.mxu0
        %v2584 = vadd.f32 0.0, %v2583
        %v2585 = vpop.f32.mrf.mxu0
        %2586 = vmatprep.mubr.f32.mxu0 0.0
        %2587 = vmatmul.mubr.f32.gmra.mxu0 %v396
        %v2588 = vpop.f32.mrf.mxu0
        %v2589 = vadd.f32 0.0, %v2588
        %v2590 = vpop.f32.mrf.mxu0
        %2591 = vmatprep.mubr.f32.mxu0 0.0
        %2592 = vmatmul.mubr.f32.gmra.mxu0 %v398
        %v2593 = vpop.f32.mrf.mxu0
        %v2594 = vadd.f32 0.0, %v2593
        %v2595 = vpop.f32.mrf.mxu0
        %2596 = vmatprep.mubr.f32.mxu0 0.0
        %2597 = vmatmul.mubr.f32.gmra.mxu0 %v400
        %v2598 = vpop.f32.mrf.mxu0
        %v2599 = vadd.f32 0.0, %v2598
        %v2600 = vpop.f32.mrf.mxu0
        %2601 = vmatprep.mubr.f32.mxu0 0.0
        %2602 = vmatmul.mubr.f32.gmra.mxu0 %v402
        %v2603 = vpop.f32.mrf.mxu0
        %v2604 = vadd.f32 0.0, %v2603
        %v2605 = vpop.f32.mrf.mxu0
        %2606 = vmatprep.mubr.f32.mxu0 0.0
        %2607 = vmatmul.mubr.f32.gmra.mxu0 %v404
        %v2608 = vpop.f32.mrf.mxu0
        %v2609 = vadd.f32 0.0, %v2608
        %v2610 = vpop.f32.mrf.mxu0
        %2611 = vmatprep.mubr.f32.mxu0 0.0
        %2612 = vmatmul.mubr.f32.gmra.mxu0 %v406
        %v2613 = vpop.f32.mrf.mxu0
        %v2614 = vadd.f32 0.0, %v2613
        %v2615 = vpop.f32.mrf.mxu0
        %2616 = vmatprep.mubr.f32.mxu0 0.0
        %2617 = vmatmul.mubr.f32.gmra.mxu0 %v408
        %v2618 = vpop.f32.mrf.mxu0
        %v2619 = vadd.f32 0.0, %v2618
        %v2620 = vpop.f32.mrf.mxu0
        %2621 = vmatprep.mubr.f32.mxu0 0.0
        %2622 = vmatmul.mubr.f32.gmra.mxu0 %v410
        %v2623 = vpop.f32.mrf.mxu0
        %v2624 = vadd.f32 0.0, %v2623
        %v2625 = vpop.f32.mrf.mxu0
        %2626 = vmatprep.mubr.f32.mxu0 0.0
        %2627 = vmatmul.mubr.f32.gmra.mxu0 %v412
        %v2628 = vpop.f32.mrf.mxu0
        %v2629 = vadd.f32 0.0, %v2628
        %v2630 = vpop.f32.mrf.mxu0
        %2631 = vmatprep.mubr.f32.mxu0 0.0
        %2632 = vmatmul.mubr.f32.gmra.mxu0 %v414
        %v2633 = vpop.f32.mrf.mxu0
        %v2634 = vadd.f32 0.0, %v2633
        %v2635 = vpop.f32.mrf.mxu0
        %2636 = vmatprep.mubr.f32.mxu0 0.0
        %2637 = vmatmul.mubr.f32.gmra.mxu0 %v416
        %v2638 = vpop.f32.mrf.mxu0
        %v2639 = vadd.f32 0.0, %v2638
        %v2640 = vpop.f32.mrf.mxu0
        %2641 = vmatprep.mubr.f32.mxu0 0.0
        %2642 = vmatmul.mubr.f32.gmra.mxu0 %v418
        %v2643 = vpop.f32.mrf.mxu0
        %v2644 = vadd.f32 0.0, %v2643
        %v2645 = vpop.f32.mrf.mxu0
        %2646 = vmatprep.mubr.f32.mxu0 0.0
        %2647 = vmatmul.mubr.f32.gmra.mxu0 %v1624
        %v2648 = vpop.f32.mrf.mxu0
        %v2649 = vadd.f32 0.0, %v2648
        %v2650 = vpop.f32.mrf.mxu0
        %2651 = vmatprep.mubr.f32.mxu0 0.0
        %2652 = vmatmul.mubr.f32.gmra.mxu0 %v1626
        %v2653 = vpop.f32.mrf.mxu0
        %v2654 = vadd.f32 0.0, %v2653
        %v2655 = vpop.f32.mrf.mxu0
        %2656 = vmatprep.mubr.f32.mxu0 0.0
        %2657 = vmatmul.mubr.f32.gmra.mxu0 %v2435
        %v2658 = vpop.f32.mrf.mxu0
        %v2659 = vadd.f32 0.0, %v2658
        %v2660 = vpop.f32.mrf.mxu0
        %2661 = vmatprep.mubr.f32.mxu0 0.0
        %2662 = vmatmul.mubr.f32.gmra.mxu0 %v2437
        %v2663 = vpop.f32.mrf.mxu0
        %v2664 = vadd.f32 0.0, %v2663
        %v2665 = vpop.f32.mrf.mxu0
        %2666 = vdwg.mxu0
        %v2667 = vadd.f32 %v2395, %v2509
        %v2668 = vadd.f32 %v2396, %v2514
        %v2669 = vadd.f32 %v2397, %v2519
        %v2670 = vadd.f32 %v2398, %v2524
        %v2671 = vadd.f32 %v2399, %v2529
        %v2672 = vadd.f32 %v2400, %v2534
        %v2673 = vadd.f32 %v2401, %v2539
        %v2674 = vadd.f32 %v2402, %v2544
        %v2675 = vadd.f32 %v2403, %v2549
        %v2676 = vadd.f32 %v2404, %v2554
        %v2677 = vadd.f32 %v2405, %v2559
        %v2678 = vadd.f32 %v2406, %v2564
        %v2679 = vadd.f32 %v2407, %v2569
        %v2680 = vadd.f32 %v2408, %v2574
        %v2681 = vadd.f32 %v2409, %v2579
        %v2682 = vadd.f32 %v2410, %v2584
        %v2683 = vadd.f32 %v2411, %v2589
        %v2684 = vadd.f32 %v2412, %v2594
        %v2685 = vadd.f32 %v2413, %v2599
        %v2686 = vadd.f32 %v2414, %v2604
        %v2687 = vadd.f32 %v2415, %v2609
        %v2688 = vadd.f32 %v2416, %v2614
        %v2689 = vadd.f32 %v2417, %v2619
        %v2690 = vadd.f32 %v2418, %v2624
        %v2691 = vadd.f32 %v2419, %v2629
        %v2692 = vadd.f32 %v2420, %v2634
        %v2693 = vadd.f32 %v2421, %v2639
        %v2694 = vadd.f32 %v2422, %v2644
        %v2695 = vadd.f32 %v2423, %v2649
        %v2696 = vadd.f32 %v2424, %v2654
        %v2697 = vadd.f32 %v2425, %v2659
        %v2698 = vadd.f32 %v2426, %v2664
        %v2699 = vrot.slane %v220, 2
        %v2700 = vrot.slane %v221, 2
        %v2701 = vsel %vm941, %v2699, %v2700
        %v2702 = vrot.slane %v222, 2
        %v2703 = vsel %vm941, %v2700, %v2702
        %s2704 = scalar_lea.vmem %s1, 32
        %v2705 = vld [vmem:[%s2704] sm:$0xf]
        %v2706 = vsel %vm355, %v2701, 0
        %v2708 = vsel %vm355, %v2703, 0
        %v2711 = vsel %vm420, %v2705, 0
        %2713 = vmatprep.subr.mxu0 0.0
        %2714 = vmatpush1.msra.mxu0 0.0
        %2715 = vmatprep.subr.mxu0 0.0
        %2716 = vmatpush1.msra.mxu0 0.0
        %2717 = vmatprep.subr.mxu0 0.0
        %2718 = vmatpush1.msra.mxu0 0.0
        %2719 = vmatprep.subr.mxu0 0.0
        %2720 = vmatpush1.msra.mxu0 0.0
        %2721 = vmatprep.subr.mxu0 0.0
        %2722 = vmatpush1.msra.mxu0 0.0
        %2723 = vmatprep.subr.mxu0 0.0
        %2724 = vmatpush1.msra.mxu0 0.0
        %2725 = vmatprep.subr.mxu0 0.0
        %2726 = vmatpush1.msra.mxu0 0.0
        %2727 = vmatprep.subr.mxu0 0.0
        %2728 = vmatpush1.msra.mxu0 0.0
        %2729 = vmatprep.subr.mxu0 0.0
        %2730 = vmatpush1.msra.mxu0 0.0
        %2731 = vmatprep.subr.mxu0 0.0
        %2732 = vmatpush1.msra.mxu0 0.0
        %2733 = vmatprep.subr.mxu0 0.0
        %2734 = vmatpush1.msra.mxu0 0.0
        %2735 = vmatprep.subr.mxu0 0.0
        %2736 = vmatpush1.msra.mxu0 0.0
        %2737 = vmatprep.subr.mxu0 0.0
        %2738 = vmatpush1.msra.mxu0 0.0
        %2739 = vmatprep.subr.mxu0 0.0
        %2740 = vmatpush1.msra.mxu0 0.0
        %2741 = vmatprep.subr.mxu0 0.0
        %2742 = vmatpush1.msra.mxu0 0.0
        %2743 = vmatprep.subr.mxu0 0.0
        %2744 = vmatpush1.msra.mxu0 %v2711
        %2745 = vmatprep.subr.mxu0 0.0
        %2746 = vmatpush2.msra.mxu0 0.0
        %2747 = vmatprep.subr.mxu0 0.0
        %2748 = vmatpush2.msra.mxu0 0.0
        %2749 = vmatprep.subr.mxu0 0.0
        %2750 = vmatpush2.msra.mxu0 0.0
        %2751 = vmatprep.subr.mxu0 0.0
        %2752 = vmatpush2.msra.mxu0 0.0
        %2753 = vmatprep.subr.mxu0 0.0
        %2754 = vmatpush2.msra.mxu0 0.0
        %2755 = vmatprep.subr.mxu0 0.0
        %2756 = vmatpush2.msra.mxu0 0.0
        %2757 = vmatprep.subr.mxu0 0.0
        %2758 = vmatpush2.msra.mxu0 0.0
        %2759 = vmatprep.subr.mxu0 0.0
        %2760 = vmatpush2.msra.mxu0 0.0
        %2761 = vmatprep.subr.mxu0 0.0
        %2762 = vmatpush2.msra.mxu0 0.0
        %2763 = vmatprep.subr.mxu0 0.0
        %2764 = vmatpush2.msra.mxu0 0.0
        %2765 = vmatprep.subr.mxu0 0.0
        %2766 = vmatpush2.msra.mxu0 0.0
        %2767 = vmatprep.subr.mxu0 0.0
        %2768 = vmatpush2.msra.mxu0 0.0
        %2769 = vmatprep.subr.mxu0 0.0
        %2770 = vmatpush2.msra.mxu0 0.0
        %2771 = vmatprep.subr.mxu0 0.0
        %2772 = vmatpush2.msra.mxu0 0.0
        %2773 = vmatprep.subr.mxu0 0.0
        %2774 = vmatpush2.msra.mxu0 0.0
        %2775 = vmatprep.subr.mxu0 0.0
        %2776 = vmatpush2.msra.mxu0 0.0
        %2777 = vmatprep.mubr.f32.mxu0 0.0
        %2778 = vmatmul.mubr.f32.gmra.mxu0 %v1032
        %v2779 = vpop.f32.mrf.mxu0
        %v2780 = vadd.f32 0.0, %v2779
        %v2781 = vpop.f32.mrf.mxu0
        %2782 = vmatprep.mubr.f32.mxu0 0.0
        %2783 = vmatmul.mubr.f32.gmra.mxu0 %v1034
        %v2784 = vpop.f32.mrf.mxu0
        %v2785 = vadd.f32 0.0, %v2784
        %v2786 = vpop.f32.mrf.mxu0
        %2787 = vmatprep.mubr.f32.mxu0 0.0
        %2788 = vmatmul.mubr.f32.gmra.mxu0 %v1036
        %v2789 = vpop.f32.mrf.mxu0
        %v2790 = vadd.f32 0.0, %v2789
        %v2791 = vpop.f32.mrf.mxu0
        %2792 = vmatprep.mubr.f32.mxu0 0.0
        %2793 = vmatmul.mubr.f32.gmra.mxu0 %v1038
        %v2794 = vpop.f32.mrf.mxu0
        %v2795 = vadd.f32 0.0, %v2794
        %v2796 = vpop.f32.mrf.mxu0
        %2797 = vmatprep.mubr.f32.mxu0 0.0
        %2798 = vmatmul.mubr.f32.gmra.mxu0 %v1040
        %v2799 = vpop.f32.mrf.mxu0
        %v2800 = vadd.f32 0.0, %v2799
        %v2801 = vpop.f32.mrf.mxu0
        %2802 = vmatprep.mubr.f32.mxu0 0.0
        %2803 = vmatmul.mubr.f32.gmra.mxu0 %v1042
        %v2804 = vpop.f32.mrf.mxu0
        %v2805 = vadd.f32 0.0, %v2804
        %v2806 = vpop.f32.mrf.mxu0
        %2807 = vmatprep.mubr.f32.mxu0 0.0
        %2808 = vmatmul.mubr.f32.gmra.mxu0 %v1044
        %v2809 = vpop.f32.mrf.mxu0
        %v2810 = vadd.f32 0.0, %v2809
        %v2811 = vpop.f32.mrf.mxu0
        %2812 = vmatprep.mubr.f32.mxu0 0.0
        %2813 = vmatmul.mubr.f32.gmra.mxu0 %v1046
        %v2814 = vpop.f32.mrf.mxu0
        %v2815 = vadd.f32 0.0, %v2814
        %v2816 = vpop.f32.mrf.mxu0
        %2817 = vmatprep.mubr.f32.mxu0 0.0
        %2818 = vmatmul.mubr.f32.gmra.mxu0 %v1048
        %v2819 = vpop.f32.mrf.mxu0
        %v2820 = vadd.f32 0.0, %v2819
        %v2821 = vpop.f32.mrf.mxu0
        %2822 = vmatprep.mubr.f32.mxu0 0.0
        %2823 = vmatmul.mubr.f32.gmra.mxu0 %v1050
        %v2824 = vpop.f32.mrf.mxu0
        %v2825 = vadd.f32 0.0, %v2824
        %v2826 = vpop.f32.mrf.mxu0
        %2827 = vmatprep.mubr.f32.mxu0 0.0
        %2828 = vmatmul.mubr.f32.gmra.mxu0 %v1052
        %v2829 = vpop.f32.mrf.mxu0
        %v2830 = vadd.f32 0.0, %v2829
        %v2831 = vpop.f32.mrf.mxu0
        %2832 = vmatprep.mubr.f32.mxu0 0.0
        %2833 = vmatmul.mubr.f32.gmra.mxu0 %v1054
        %v2834 = vpop.f32.mrf.mxu0
        %v2835 = vadd.f32 0.0, %v2834
        %v2836 = vpop.f32.mrf.mxu0
        %2837 = vmatprep.mubr.f32.mxu0 0.0
        %2838 = vmatmul.mubr.f32.gmra.mxu0 %v1056
        %v2839 = vpop.f32.mrf.mxu0
        %v2840 = vadd.f32 0.0, %v2839
        %v2841 = vpop.f32.mrf.mxu0
        %2842 = vmatprep.mubr.f32.mxu0 0.0
        %2843 = vmatmul.mubr.f32.gmra.mxu0 %v1058
        %v2844 = vpop.f32.mrf.mxu0
        %v2845 = vadd.f32 0.0, %v2844
        %v2846 = vpop.f32.mrf.mxu0
        %2847 = vmatprep.mubr.f32.mxu0 0.0
        %2848 = vmatmul.mubr.f32.gmra.mxu0 %v1060
        %v2849 = vpop.f32.mrf.mxu0
        %v2850 = vadd.f32 0.0, %v2849
        %v2851 = vpop.f32.mrf.mxu0
        %2852 = vmatprep.mubr.f32.mxu0 0.0
        %2853 = vmatmul.mubr.f32.gmra.mxu0 %v1062
        %v2854 = vpop.f32.mrf.mxu0
        %v2855 = vadd.f32 0.0, %v2854
        %v2856 = vpop.f32.mrf.mxu0
        %2857 = vmatprep.mubr.f32.mxu0 0.0
        %2858 = vmatmul.mubr.f32.gmra.mxu0 %v1064
        %v2859 = vpop.f32.mrf.mxu0
        %v2860 = vadd.f32 0.0, %v2859
        %v2861 = vpop.f32.mrf.mxu0
        %2862 = vmatprep.mubr.f32.mxu0 0.0
        %2863 = vmatmul.mubr.f32.gmra.mxu0 %v1066
        %v2864 = vpop.f32.mrf.mxu0
        %v2865 = vadd.f32 0.0, %v2864
        %v2866 = vpop.f32.mrf.mxu0
        %2867 = vmatprep.mubr.f32.mxu0 0.0
        %2868 = vmatmul.mubr.f32.gmra.mxu0 %v1068
        %v2869 = vpop.f32.mrf.mxu0
        %v2870 = vadd.f32 0.0, %v2869
        %v2871 = vpop.f32.mrf.mxu0
        %2872 = vmatprep.mubr.f32.mxu0 0.0
        %2873 = vmatmul.mubr.f32.gmra.mxu0 %v1070
        %v2874 = vpop.f32.mrf.mxu0
        %v2875 = vadd.f32 0.0, %v2874
        %v2876 = vpop.f32.mrf.mxu0
        %2877 = vmatprep.mubr.f32.mxu0 0.0
        %2878 = vmatmul.mubr.f32.gmra.mxu0 %v1072
        %v2879 = vpop.f32.mrf.mxu0
        %v2880 = vadd.f32 0.0, %v2879
        %v2881 = vpop.f32.mrf.mxu0
        %2882 = vmatprep.mubr.f32.mxu0 0.0
        %2883 = vmatmul.mubr.f32.gmra.mxu0 %v1074
        %v2884 = vpop.f32.mrf.mxu0
        %v2885 = vadd.f32 0.0, %v2884
        %v2886 = vpop.f32.mrf.mxu0
        %2887 = vmatprep.mubr.f32.mxu0 0.0
        %2888 = vmatmul.mubr.f32.gmra.mxu0 %v1076
        %v2889 = vpop.f32.mrf.mxu0
        %v2890 = vadd.f32 0.0, %v2889
        %v2891 = vpop.f32.mrf.mxu0
        %2892 = vmatprep.mubr.f32.mxu0 0.0
        %2893 = vmatmul.mubr.f32.gmra.mxu0 %v1078
        %v2894 = vpop.f32.mrf.mxu0
        %v2895 = vadd.f32 0.0, %v2894
        %v2896 = vpop.f32.mrf.mxu0
        %2897 = vmatprep.mubr.f32.mxu0 0.0
        %2898 = vmatmul.mubr.f32.gmra.mxu0 %v1080
        %v2899 = vpop.f32.mrf.mxu0
        %v2900 = vadd.f32 0.0, %v2899
        %v2901 = vpop.f32.mrf.mxu0
        %2902 = vmatprep.mubr.f32.mxu0 0.0
        %2903 = vmatmul.mubr.f32.gmra.mxu0 %v1082
        %v2904 = vpop.f32.mrf.mxu0
        %v2905 = vadd.f32 0.0, %v2904
        %v2906 = vpop.f32.mrf.mxu0
        %2907 = vmatprep.mubr.f32.mxu0 0.0
        %2908 = vmatmul.mubr.f32.gmra.mxu0 %v1084
        %v2909 = vpop.f32.mrf.mxu0
        %v2910 = vadd.f32 0.0, %v2909
        %v2911 = vpop.f32.mrf.mxu0
        %2912 = vmatprep.mubr.f32.mxu0 0.0
        %2913 = vmatmul.mubr.f32.gmra.mxu0 %v1086
        %v2914 = vpop.f32.mrf.mxu0
        %v2915 = vadd.f32 0.0, %v2914
        %v2916 = vpop.f32.mrf.mxu0
        %2917 = vmatprep.mubr.f32.mxu0 0.0
        %2918 = vmatmul.mubr.f32.gmra.mxu0 %v1895
        %v2919 = vpop.f32.mrf.mxu0
        %v2920 = vadd.f32 0.0, %v2919
        %v2921 = vpop.f32.mrf.mxu0
        %2922 = vmatprep.mubr.f32.mxu0 0.0
        %2923 = vmatmul.mubr.f32.gmra.mxu0 %v1897
        %v2924 = vpop.f32.mrf.mxu0
        %v2925 = vadd.f32 0.0, %v2924
        %v2926 = vpop.f32.mrf.mxu0
        %2927 = vmatprep.mubr.f32.mxu0 0.0
        %2928 = vmatmul.mubr.f32.gmra.mxu0 %v2706
        %v2929 = vpop.f32.mrf.mxu0
        %v2930 = vadd.f32 0.0, %v2929
        %v2931 = vpop.f32.mrf.mxu0
        %2932 = vmatprep.mubr.f32.mxu0 0.0
        %2933 = vmatmul.mubr.f32.gmra.mxu0 %v2708
        %v2934 = vpop.f32.mrf.mxu0
        %v2935 = vadd.f32 0.0, %v2934
        %v2936 = vpop.f32.mrf.mxu0
        %2937 = vdwg.mxu0
        %v2938 = vadd.f32 %v2667, %v2780
        %v2939 = vadd.f32 %v2668, %v2785
        %v2940 = vadd.f32 %v2669, %v2790
        %v2941 = vadd.f32 %v2670, %v2795
        %v2942 = vadd.f32 %v2671, %v2800
        %v2943 = vadd.f32 %v2672, %v2805
        %v2944 = vadd.f32 %v2673, %v2810
        %v2945 = vadd.f32 %v2674, %v2815
        %v2946 = vadd.f32 %v2675, %v2820
        %v2947 = vadd.f32 %v2676, %v2825
        %v2948 = vadd.f32 %v2677, %v2830
        %v2949 = vadd.f32 %v2678, %v2835
        %v2950 = vadd.f32 %v2679, %v2840
        %v2951 = vadd.f32 %v2680, %v2845
        %v2952 = vadd.f32 %v2681, %v2850
        %v2953 = vadd.f32 %v2682, %v2855
        %v2954 = vadd.f32 %v2683, %v2860
        %v2955 = vadd.f32 %v2684, %v2865
        %v2956 = vadd.f32 %v2685, %v2870
        %v2957 = vadd.f32 %v2686, %v2875
        %v2958 = vadd.f32 %v2687, %v2880
        %v2959 = vadd.f32 %v2688, %v2885
        %v2960 = vadd.f32 %v2689, %v2890
        %v2961 = vadd.f32 %v2690, %v2895
        %v2962 = vadd.f32 %v2691, %v2900
        %v2963 = vadd.f32 %v2692, %v2905
        %v2964 = vadd.f32 %v2693, %v2910
        %v2965 = vadd.f32 %v2694, %v2915
        %v2966 = vadd.f32 %v2695, %v2920
        %v2967 = vadd.f32 %v2696, %v2925
        %v2968 = vadd.f32 %v2697, %v2930
        %v2969 = vadd.f32 %v2698, %v2935
        %v2970 = vld [vmem:[%s2] sm:$0x1]
        %v2972 = vlaneseq
        %v2973 = vshrl.u32 %v2972, 7
        %v2974 = vsub.s32 0, %v2973
        %v2975 = vrot.slane %v2970, %v2974
        %v2977 = vadd.f32 %v2938, %v2975
        %v2978 = vadd.f32 %v2939, %v2975
        %v2979 = vadd.f32 %v2940, %v2975
        %v2980 = vadd.f32 %v2941, %v2975
        %v2981 = vadd.f32 %v2942, %v2975
        %v2982 = vadd.f32 %v2943, %v2975
        %v2983 = vadd.f32 %v2944, %v2975
        %v2984 = vadd.f32 %v2945, %v2975
        %v2985 = vadd.f32 %v2946, %v2975
        %v2986 = vadd.f32 %v2947, %v2975
        %v2987 = vadd.f32 %v2948, %v2975
        %v2988 = vadd.f32 %v2949, %v2975
        %v2989 = vadd.f32 %v2950, %v2975
        %v2990 = vadd.f32 %v2951, %v2975
        %v2991 = vadd.f32 %v2952, %v2975
        %v2992 = vadd.f32 %v2953, %v2975
        %v2993 = vadd.f32 %v2954, %v2975
        %v2994 = vadd.f32 %v2955, %v2975
        %v2995 = vadd.f32 %v2956, %v2975
        %v2996 = vadd.f32 %v2957, %v2975
        %v2997 = vadd.f32 %v2958, %v2975
        %v2998 = vadd.f32 %v2959, %v2975
        %v2999 = vadd.f32 %v2960, %v2975
        %v3000 = vadd.f32 %v2961, %v2975
        %v3001 = vadd.f32 %v2962, %v2975
        %v3002 = vadd.f32 %v2963, %v2975
        %v3003 = vadd.f32 %v2964, %v2975
        %v3004 = vadd.f32 %v2965, %v2975
        %v3005 = vadd.f32 %v2966, %v2975
        %v3006 = vadd.f32 %v2967, %v2975
        %v3007 = vadd.f32 %v2968, %v2975
        %v3008 = vadd.f32 %v2969, %v2975
        %v3009 = vmax.f32 %v2977, 0.0
        %v3010 = vmax.f32 %v2978, 0.0
        %v3011 = vmax.f32 %v2979, 0.0
        %v3012 = vmax.f32 %v2980, 0.0
        %v3013 = vmax.f32 %v2981, 0.0
        %v3014 = vmax.f32 %v2982, 0.0
        %v3015 = vmax.f32 %v2983, 0.0
        %v3016 = vmax.f32 %v2984, 0.0
        %v3017 = vmax.f32 %v2985, 0.0
        %v3018 = vmax.f32 %v2986, 0.0
        %v3019 = vmax.f32 %v2987, 0.0
        %v3020 = vmax.f32 %v2988, 0.0
        %v3021 = vmax.f32 %v2989, 0.0
        %v3022 = vmax.f32 %v2990, 0.0
        %v3023 = vmax.f32 %v2991, 0.0
        %v3024 = vmax.f32 %v2992, 0.0
        %v3025 = vmax.f32 %v2993, 0.0
        %v3026 = vmax.f32 %v2994, 0.0
        %v3027 = vmax.f32 %v2995, 0.0
        %v3028 = vmax.f32 %v2996, 0.0
        %v3029 = vmax.f32 %v2997, 0.0
        %v3030 = vmax.f32 %v2998, 0.0
        %v3031 = vmax.f32 %v2999, 0.0
        %v3032 = vmax.f32 %v3000, 0.0
        %v3033 = vmax.f32 %v3001, 0.0
        %v3034 = vmax.f32 %v3002, 0.0
        %v3035 = vmax.f32 %v3003, 0.0
        %v3036 = vmax.f32 %v3004, 0.0
        %v3037 = vmax.f32 %v3005, 0.0
        %v3038 = vmax.f32 %v3006, 0.0
        %v3039 = vmax.f32 %v3007, 0.0
        %v3040 = vmax.f32 %v3008, 0.0
        %3041 = vst [vmem:[%s163] sm:$0xff] %v3009
        %3042 = vst [vmem:[%s163 + $0x8] sm:$0xff] %v3010
        %3043 = vst [vmem:[%s163 + $0x10] sm:$0xff] %v3011
        %3044 = vst [vmem:[%s163 + $0x18] sm:$0xff] %v3012
        %3045 = vst [vmem:[%s163 + $0x20] sm:$0xff] %v3013
        %3046 = vst [vmem:[%s163 + $0x28] sm:$0xff] %v3014
        %3047 = vst [vmem:[%s163 + $0x30] sm:$0xff] %v3015
        %3048 = vst [vmem:[%s163 + $0x38] sm:$0xff] %v3016
        %3049 = vst [vmem:[%s163 + $0x40] sm:$0xff] %v3017
        %3050 = vst [vmem:[%s163 + $0x48] sm:$0xff] %v3018
        %3051 = vst [vmem:[%s163 + $0x50] sm:$0xff] %v3019
        %3052 = vst [vmem:[%s163 + $0x58] sm:$0xff] %v3020
        %3053 = vst [vmem:[%s163 + $0x60] sm:$0xff] %v3021
        %3054 = vst [vmem:[%s163 + $0x68] sm:$0xff] %v3022
        %3055 = vst [vmem:[%s163 + $0x70] sm:$0xff] %v3023
        %3056 = vst [vmem:[%s163 + $0x78] sm:$0xff] %v3024
        %3057 = vst [vmem:[%s163 + $0x80] sm:$0xff] %v3025
        %3058 = vst [vmem:[%s163 + $0x88] sm:$0xff] %v3026
        %3059 = vst [vmem:[%s163 + $0x90] sm:$0xff] %v3027
        %3060 = vst [vmem:[%s163 + $0x98] sm:$0xff] %v3028
        %3061 = vst [vmem:[%s163 + $0xa0] sm:$0xff] %v3029
        %3062 = vst [vmem:[%s163 + $0xa8] sm:$0xff] %v3030
        %3063 = vst [vmem:[%s163 + $0xb0] sm:$0xff] %v3031
        %3064 = vst [vmem:[%s163 + $0xb8] sm:$0xff] %v3032
        %3065 = vst [vmem:[%s163 + $0xc0] sm:$0xff] %v3033
        %3066 = vst [vmem:[%s163 + $0xc8] sm:$0xff] %v3034
        %3067 = vst [vmem:[%s163 + $0xd0] sm:$0xff] %v3035
        %3068 = vst [vmem:[%s163 + $0xd8] sm:$0xff] %v3036
        %3069 = vst [vmem:[%s163 + $0xe0] sm:$0xff] %v3037
        %3070 = vst [vmem:[%s163 + $0xe8] sm:$0xff] %v3038
        %3071 = vst [vmem:[%s163 + $0xf0] sm:$0xff] %v3039
        %3072 = vst [vmem:[%s163 + $0xf8] sm:$0xff] %v3040
        %s3073 = sand.u32 %s93, 1
        %s3074 = scalar_lea.sflag [#allocation3], %s3073
        %s3075 = sand.u32 %s93, 1
        %s3076 = smul.addr %s3075, 256
        %s3077 = scalar_lea.vmem [#allocation2], %s3076
        // Predicated region
        $region33: #{tpu_custom_call.1} parent=31 // pred_check
          %p3078 = pneg %p103
        $region34: #{tpu_custom_call.1} parent=31 // pred_check_branch
          %3080 = sbr.rel (%p3078) target = $region36
        $region35: #{tpu_custom_call.1} parent=31 // pred_region
          %s3082 = ssub.s32 4096, 4096
          %3083 = vsyncadd %s3074, %s3082
          %s3084 = smul.addr %s17, 32
          %s3085 = smul.addr %s3084, 128
          %s3086 = scalar_lea.hbm %s3, %s3085
          %s3087 = sshll.u32 %s3077, 4
          %s3088 = int_to_ptr.vmem [resolvable:$true] %s3087
          %3093 = dma.vmem_to_hbm [thread:$0]  %s3088, 4096, %s3086, %s3074, 128, 128, 8
        $region36: #{tpu_custom_call.1} parent=31 // pred_fallthru
          _
      $region32: #{tpu_custom_call.1} parent=5 // pred_fallthru
        _
      %p3094 = scmp.le.s32.totalorder 2, %s12
      // Predicated region
      $region37: #{tpu_custom_call.1} parent=5 // pred_check
        %p3095 = pneg %p3094
      $region38: #{tpu_custom_call.1} parent=5 // pred_check_branch
        %3097 = sbr.rel (%p3095) target = $region40
      $region39: #{tpu_custom_call.1} parent=5 // pred_region
        %s3098 = ssub.s32 %s12, 2
        // Predicated region
        $region41: #{tpu_custom_call.1} parent=39 // pred_check
          %p3099 = pneg %p109
        $region42: #{tpu_custom_call.1} parent=39 // pred_check_branch
          %3101 = sbr.rel (%p3099) target = $region44
        $region43: #{tpu_custom_call.1} parent=39 // pred_region
          %s3102 = sand.u32 %s94, 1
          %s3103 = scalar_lea.sflag [#allocation3], %s3102
          %s3104 = sand.u32 %s94, 1
          %s3105 = smul.addr %s3104, 256
          %s3106 = scalar_lea.vmem [#allocation2], %s3105
          %3107 = dma.done %s3103, 4096
        $region44: #{tpu_custom_call.1} parent=39 // pred_fallthru
          _
      $region40: #{tpu_custom_call.1} parent=5 // pred_fallthru
        _
    $region6: #{tpu_custom_call.1} parent=1 // loop_footer
      %s16 = sadd.s32 1, %s12
    $region7: #{tpu_custom_call.1} parent=1 // loop_footer_branch
      %11 = sbr.rel target = $region3
    $region8: #{tpu_custom_call.1} parent=1 // loop_exit
      _
    %3108 = vsyncpa [#allocation3], 1
    %s3109 = scalar_lea.sflag [#allocation3], 1
    %3110 = vsyncpa %s3109, 1

</llo_original>
